<compile_context>
chip_gen: v6e
topology: v6e:2x2x1
jax: 0.10.0
libtpu: 0.0.40
codegen_flags: <defaults>
</compile_context>

<pallas_src>
import functools

import jax
import jax.numpy as jnp
from jax import lax
from jax.experimental import pallas as pl
from jax.experimental.pallas import tpu as pltpu


# ---------------------------------------------------------------------------
# Small helpers
# ---------------------------------------------------------------------------
def _round_up(x, m):
    return ((x + m - 1) // m) * m


def _pick_tile(dim, target, align):
    """Largest tile <= target that divides `dim` and is a multiple of `align`;
    falls back to the full dim (full-extent blocks always satisfy (8,128))."""
    if dim <= target:
        return dim
    t = (target // align) * align
    while t >= align:
        if dim % t == 0:
            return t
        t -= align
    return dim


def _prefer_two_blocks(dim, tile, align):
    """Ensure >=2 blocks along a 'parallel' grid axis (v7x megacore) if cheap."""
    if dim // tile >= 2:
        return tile
    half = tile // 2
    if half >= align and half % align == 0 and dim % half == 0:
        return half
    return tile


def _detect_vmem_limit():
    """Scoped VMEM budget: physical minus >=16 MiB headroom (matters on v7x's
    64 MiB); >=32 MiB so v5e/v6e aren't throttled by the 16/32 MiB defaults."""
    try:
        phys = int(pltpu.get_tpu_info().vmem_capacity_bytes)
    except Exception:
        phys = 64 * 1024 * 1024
    return int(max(32 * 1024 * 1024,
                   min(phys - 16 * 1024 * 1024, 100 * 1024 * 1024)))


_VMEM_LIMIT = _detect_vmem_limit()
_W_RESIDENT_BYTES = 8 * 1024 * 1024   # keep fused weight resident below this


# ---------------------------------------------------------------------------
# Kernel A: fused projection  Y = X @ W + b  with gate nonlinearities fused
# into the epilogue (lane-aligned slices, Hp % 128 == 0).
# ---------------------------------------------------------------------------
def _gates_epilogue(y, b_ref, z_ref, f_ref, o_ref):
    y = y + b_ref[...].astype(jnp.float32)
    hp = z_ref.shape[-1]
    z_ref[...] = jnp.tanh(y[:, :hp]).astype(z_ref.dtype)
    f_ref[...] = jax.nn.sigmoid(y[:, hp:2 * hp]).astype(f_ref.dtype)
    o_ref[...] = jax.nn.sigmoid(y[:, 2 * hp:]).astype(o_ref.dtype)


def _proj_gates_single_k_kernel(x_ref, w_ref, b_ref, z_ref, f_ref, o_ref):
    # W is resident (constant index_map); no accumulator round trip needed.
    y = jnp.dot(x_ref[...], w_ref[...], preferred_element_type=jnp.float32)
    _gates_epilogue(y, b_ref, z_ref, f_ref, o_ref)


def _proj_gates_multi_k_kernel(x_ref, w_ref, b_ref, z_ref, f_ref, o_ref, acc_ref):
    k = pl.program_id(1)
    prod = jnp.dot(x_ref[...], w_ref[...], preferred_element_type=jnp.float32)

    @pl.when(k == 0)
    def _():
        acc_ref[...] = prod          # assign (no zero-init + add)

    @pl.when(k > 0)
    def _():
        acc_ref[...] += prod

    @pl.when(k == pl.num_programs(1) - 1)
    def _():
        _gates_epilogue(acc_ref[...], b_ref, z_ref, f_ref, o_ref)


# ---------------------------------------------------------------------------
# Kernel B: ForgetMult recurrence on (S, Gtot, 128) lane-dense tiles.
# grid = (Gtot tiles [parallel], time blocks [arbitrary, innermost])
# ---------------------------------------------------------------------------
def _forgetmult_kernel(z_ref, f_ref, o_ref, h0_ref, h_ref, clast_ref, c_scr):
    ti = pl.program_id(1)

    @pl.when(ti == 0)
    def _():
        c_scr[...] = h0_ref[0].astype(jnp.float32)

    n_t = h_ref.shape[0]                           # static time-block length

    def body(t, c):
        # Full (G,128) tiles per timestep; math in f32 (no bf16 VPU on v5e).
        z = z_ref[t].astype(jnp.float32)
        f = f_ref[t].astype(jnp.float32)
        o = o_ref[t].astype(jnp.float32)
        c = f * z + (1.0 - f) * c
        h_ref[t] = (o * c).astype(h_ref.dtype)
        return c

    c = lax.fori_loop(0, n_t, body, c_scr[...], unroll=min(8, n_t))
    c_scr[...] = c

    @pl.when(ti == pl.num_programs(1) - 1)
    def _():
        clast_ref[0] = c.astype(clast_ref.dtype)


# ---------------------------------------------------------------------------
# One QRNN layer
# ---------------------------------------------------------------------------
def qrnn_layer(x, weight, bias, h0, *, use_bf16=False):
    """x: (S, B, Din); weight: (3H, Din) (nn.Linear layout); bias: (3H,);
    h0: (B, H).  Returns (H_out (S, B, H), C_last (B, H))."""
    S, B, Din = x.shape
    H = weight.shape[0] // 3
    dtype = x.dtype
    op_dtype = jnp.bfloat16 if use_bf16 else dtype     # MXU operand dtype
    gate_dtype = jnp.bfloat16 if use_bf16 else dtype   # Z/F/O storage dtype

    # ---- lane-align the gate width: pad H -> Hp (multiple of 128) ----------
    # Padded columns have zero weight & bias -> Z=0, F=O=0.5, C stays 0.
    Hp = _round_up(H, 128)
    wt = weight.T.reshape(Din, 3, H)
    bt = bias.reshape(3, H)
    if Hp != H:
        wt = jnp.pad(wt, ((0, 0), (0, 0), (0, Hp - H)))
        bt = jnp.pad(bt, ((0, 0), (0, Hp - H)))
    w = wt.reshape(Din, 3 * Hp).astype(op_dtype)
    bvec = bt.reshape(1, 3 * Hp).astype(jnp.float32)

    in_bytes = jnp.dtype(op_dtype).itemsize
    gate_bytes = jnp.dtype(gate_dtype).itemsize

    # ---- Kernel A tiling: keep W resident in VMEM when it fits -------------
    M = S * B
    w_bytes = Din * 3 * Hp * in_bytes
    if w_bytes <= _W_RESIDENT_BYTES:
        tk, Kp, multi_k = Din, Din, False
    else:
        multi_k = True
        for cand in (512, 384, 256, 128):
            if Din % cand == 0:
                tk, Kp = cand, Din
                break
        else:
            tk = 512
            Kp = _round_up(Din, tk)

    # tm from the VMEM budget (double-buffered X + Z/F/O, [+ f32 acc scratch]).
    per_row = 2 * tk * in_bytes + 6 * Hp * gate_bytes + (3 * Hp * 4 if multi_k else 0)
    budget = _VMEM_LIMIT - 2 * tk * 3 * Hp * in_bytes - 4 * 1024 * 1024
    tm_cap = max(8, (budget // per_row) // 8 * 8)
    tm = int(min(512, tm_cap, _round_up(M, 8)))
    Mp = _round_up(M, tm)
    tm = _prefer_two_blocks(Mp, tm, 8)               # v7x: >=2 blocks if cheap
    nm = Mp // tm
    nk = Kp // tk

    x2 = x.reshape(M, Din).astype(op_dtype)
    if Mp != M or Kp != Din:
        x2 = jnp.pad(x2, ((0, Mp - M), (0, Kp - Din)))
    if Kp != Din:
        w = jnp.pad(w, ((0, Kp - Din), (0, 0)))

    out_sds = (jax.ShapeDtypeStruct((Mp, Hp), gate_dtype),
               jax.ShapeDtypeStruct((Mp, Hp), gate_dtype),
               jax.ShapeDtypeStruct((Mp, Hp), gate_dtype))

    if not multi_k:
        grid = (nm,)
        in_specs = [
            pl.BlockSpec((tm, Kp), lambda i: (i, 0)),          # X
            pl.BlockSpec((Kp, 3 * Hp), lambda i: (0, 0)),      # W: resident
            pl.BlockSpec((1, 3 * Hp), lambda i: (0, 0)),       # bias
        ]
        out_specs = [pl.BlockSpec((tm, Hp), lambda i: (i, 0))] * 3
        scratch = []
        kern = _proj_gates_single_k_kernel
        dims = ("parallel",)
    else:
        grid = (nm, nk)
        in_specs = [
            pl.BlockSpec((tm, tk), lambda i, k: (i, k)),       # X
            pl.BlockSpec((tk, 3 * Hp), lambda i, k: (k, 0)),   # W (streamed)
            pl.BlockSpec((1, 3 * Hp), lambda i, k: (0, 0)),    # bias
        ]
        out_specs = [pl.BlockSpec((tm, Hp), lambda i, k: (i, 0))] * 3
        scratch = [pltpu.VMEM((tm, 3 * Hp), jnp.float32)]
        kern = _proj_gates_multi_k_kernel
        dims = ("parallel", "arbitrary")

    z2, f2, o2 = pl.pallas_call(
        kern,
        out_shape=out_sds,
        grid_spec=pltpu.PrefetchScalarGridSpec(
            num_scalar_prefetch=0,
            grid=grid,
            in_specs=in_specs,
            out_specs=out_specs,
            scratch_shapes=scratch,
        ),
        compiler_params=pltpu.CompilerParams(
            dimension_semantics=dims,
            vmem_limit_bytes=_VMEM_LIMIT),
    )(x2, w, bvec)

    # ---- Kernel B: ForgetMult on (S, Gtot, 128) lane-dense tiles ------------
    BHp = B * Hp
    Gtot = BHp // 128            # Hp is a multiple of 128 -> exact

    def to3d(a):
        if Mp != M:
            a = a[:M]
        return a.reshape(S, Gtot, 128)

    z3, f3, o3 = to3d(z2), to3d(f2), to3d(o2)

    h0p = h0
    if Hp != H:
        h0p = jnp.pad(h0p, ((0, 0), (0, Hp - H)))
    h03 = h0p.reshape(1, Gtot, 128)                  # keep f32 precision for C0

    t_blk = _pick_tile(S, 128, 1)                    # big time blocks
    G = _pick_tile(Gtot, 16, 8)                      # (G,128) full vreg tiles
    G = _prefer_two_blocks(Gtot, G, 8)               # v7x megacore
    # keep each per-array block comfortably inside VMEM
    while t_blk > 1 and t_blk * G * 128 * 4 > 4 * 1024 * 1024:
        t_blk = _pick_tile(S, max(1, t_blk // 2), 1)

    h3, clast3 = pl.pallas_call(
        _forgetmult_kernel,
        out_shape=(jax.ShapeDtypeStruct((S, Gtot, 128), dtype),
                   jax.ShapeDtypeStruct((1, Gtot, 128), dtype)),
        grid_spec=pltpu.PrefetchScalarGridSpec(
            num_scalar_prefetch=0,
            grid=(Gtot // G, S // t_blk),
            in_specs=[
                pl.BlockSpec((t_blk, G, 128), lambda g, t: (t, g, 0)),  # Z
                pl.BlockSpec((t_blk, G, 128), lambda g, t: (t, g, 0)),  # F
                pl.BlockSpec((t_blk, G, 128), lambda g, t: (t, g, 0)),  # O
                pl.BlockSpec((1, G, 128), lambda g, t: (0, g, 0)),      # h0
            ],
            out_specs=[
                pl.BlockSpec((t_blk, G, 128), lambda g, t: (t, g, 0)),  # H
                pl.BlockSpec((1, G, 128), lambda g, t: (0, g, 0)),      # C_last
            ],
            scratch_shapes=[pltpu.VMEM((G, 128), jnp.float32)],
        ),
        compiler_params=pltpu.CompilerParams(
            dimension_semantics=("parallel", "arbitrary"),
            vmem_limit_bytes=_VMEM_LIMIT),
    )(z3, f3, o3, h03)

    h_out = h3.reshape(S, B, Hp)
    c_last = clast3.reshape(B, Hp)
    if Hp != H:
        h_out = h_out[:, :, :H]
        c_last = c_last[:, :H]
    return h_out, c_last


# ---------------------------------------------------------------------------
# Multi-layer QRNN forward (dropout=0, eval mode)
# ---------------------------------------------------------------------------
@functools.partial(jax.jit, static_argnames=("num_layers", "use_bf16"))
def qrnn_forward(x, weights, biases, num_layers, hidden=None, use_bf16=False):
    """x: (S, B, input_size). Returns (output (S,B,H), next_hidden (L,B,H))."""
    S, B, _ = x.shape
    H = weights[0].shape[0] // 3
    output = x
    next_hidden = []
    # TODO(synk): cross-pallas_call DMA-future prefetch (P10) of layer l+1
    # weights is not implemented; weights are DMA'd once per layer via BlockSpec.
    for l in range(num_layers):
        h0 = jnp.zeros((B, H), x.dtype) if hidden is None else hidden[l]
        output, c_last = qrnn_layer(output, weights[l], biases[l], h0,
                                    use_bf16=use_bf16)
        next_hidden.append(c_last[None])
    return output, jnp.concatenate(next_hidden, axis=0)


def init_params(key, input_size, hidden_size, num_layers):
    """Deterministic nn.Linear-style init: U(-1/sqrt(fan_in), 1/sqrt(fan_in))."""
    weights, biases = [], []
    for l in range(num_layers):
        din = input_size if l == 0 else hidden_size
        key, kw, kb = jax.random.split(key, 3)
        bound = 1.0 / jnp.sqrt(jnp.float32(din))
        w = jax.random.uniform(kw, (3 * hidden_size, din), jnp.float32, -bound, bound)
        b = jax.random.uniform(kb, (3 * hidden_size,), jnp.float32, -bound, bound)
        weights.append(w)
        biases.append(b)
    return weights, biases


def _reference_qrnn(x, weights, biases):
    """Pure-JAX reference (mirrors the PyTorch code)."""
    output = x
    next_hidden = []
    for w, b in zip(weights, biases):
        y = output @ w.T + b
        H = w.shape[0] // 3
        z = jnp.tanh(y[..., :H])
        f = jax.nn.sigmoid(y[..., H:2 * H])
        o = jax.nn.sigmoid(y[..., 2 * H:])

        def step(c_prev, zfo):
            z_t, f_t, o_t = zfo
            c = f_t * z_t + (1.0 - f_t) * c_prev
            return c, c

        c_last, c_all = jax.lax.scan(
            step, jnp.zeros(output.shape[1:2] + (H,), x.dtype), (z, f, o))
        output = o * c_all
        next_hidden.append(c_last[None])
    return output, jnp.concatenate(next_hidden, 0)


if __name__ == "__main__":
    # Small shapes: seq=8, batch=2, input_size=16, hidden=32, num_layers=2
    S, B, D_IN, H, L = 8, 2, 16, 32, 2
    key = jax.random.PRNGKey(0)
    key, kx = jax.random.split(key)
    x = jax.random.normal(kx, (S, B, D_IN), jnp.float32)
    weights, biases = init_params(key, D_IN, H, L)

    # f32 path (exact-ish)
    out, next_hidden = qrnn_forward(x, weights, biases, L)
    out = jax.block_until_ready(out)
    next_hidden = jax.block_until_ready(next_hidden)

    ref_out, ref_hid = _reference_qrnn(x, weights, biases)
    assert out.shape == (S, B, H) and next_hidden.shape == (L, B, H)
    assert jnp.allclose(out, ref_out, atol=1e-5, rtol=1e-5)
    assert jnp.allclose(next_hidden, ref_hid, atol=1e-5, rtol=1e-5)

    # bf16 MXU / bf16 gate-storage fast path (bounded activations -> loose tol)
    out_bf, hid_bf = qrnn_forward(x, weights, biases, L, use_bf16=True)
    out_bf = jax.block_until_ready(out_bf)
    hid_bf = jax.block_until_ready(hid_bf)
    assert jnp.allclose(out_bf, ref_out, atol=1e-1, rtol=1e-1)
    assert jnp.allclose(hid_bf, ref_hid, atol=1e-1, rtol=1e-1)

    print("KERNEL_OK")
</pallas_src>

<mosaic_0001>
module attributes {stable_mosaic.version = 11 : i64} {
  func.func @_proj_gates_single_k_kernel(%arg0: i32, %arg1: memref<8x16xf32, #tpu.memory_space<vmem>>, %arg2: memref<16x384xf32, #tpu.memory_space<vmem>>, %arg3: memref<1x384xf32, #tpu.memory_space<vmem>>, %arg4: memref<8x128xf32, #tpu.memory_space<vmem>>, %arg5: memref<8x128xf32, #tpu.memory_space<vmem>>, %arg6: memref<8x128xf32, #tpu.memory_space<vmem>>) attributes {dimension_semantics = [#tpu.dimension_semantics<parallel>], iteration_bounds = array<i64: 2>, scalar_prefetch = 0 : i64, scratch_operands = 0 : i64, tpu.core_type = #tpu.core_type<tc>, window_params = [{transform_indices = @transform_0, window_bounds = array<i64: 8, 16>}, {pipeline_mode = #tpu.pipeline_mode<synchronous>, transform_indices = @transform_1, window_bounds = array<i64: 16, 384>}, {pipeline_mode = #tpu.pipeline_mode<synchronous>, transform_indices = @transform_2, window_bounds = array<i64: 1, 384>}, {transform_indices = @transform_3, window_bounds = array<i64: 8, 128>}, {transform_indices = @transform_4, window_bounds = array<i64: 8, 128>}, {transform_indices = @transform_5, window_bounds = array<i64: 8, 128>}]} {
    %c0 = arith.constant 0 : index
    %c0_0 = arith.constant 0 : index
    %0 = vector.load %arg1[%c0, %c0_0] : memref<8x16xf32, #tpu.memory_space<vmem>>, vector<8x16xf32>
    %c0_1 = arith.constant 0 : index
    %c0_2 = arith.constant 0 : index
    %1 = vector.load %arg2[%c0_1, %c0_2] : memref<16x384xf32, #tpu.memory_space<vmem>>, vector<16x384xf32>
    %cst = arith.constant dense<0.000000e+00> : vector<8x384xf32>
    %2 = tpu.matmul %0, %1, %cst {dimension_numbers = #tpu.dot_dimension_numbers<[1], [0], [0], [1], [0, 0, 1, 1], [], []>} : vector<8x16xf32>, vector<16x384xf32>, vector<8x384xf32> -> vector<8x384xf32>
    %c0_3 = arith.constant 0 : index
    %c0_4 = arith.constant 0 : index
    %3 = vector.load %arg3[%c0_3, %c0_4] : memref<1x384xf32, #tpu.memory_space<vmem>>, vector<1x384xf32>
    %4 = vector.broadcast %3 : vector<1x384xf32> to vector<8x384xf32>
    %5 = arith.addf %2, %4 : vector<8x384xf32>
    %6 = vector.extract_strided_slice %5 {offsets = [0, 0], sizes = [8, 128], strides = [1, 1]} : vector<8x384xf32> to vector<8x128xf32>
    %7 = math.tanh %6 : vector<8x128xf32>
    %c0_5 = arith.constant 0 : index
    %c0_6 = arith.constant 0 : index
    %8 = vector.load %arg4[%c0_5, %c0_6] : memref<8x128xf32, #tpu.memory_space<vmem>>, vector<8x128xf32>
    tpu.vector_store %arg4[%c0_5, %c0_6], %7 {strides = array<i32>} : memref<8x128xf32, #tpu.memory_space<vmem>>, vector<8x128xf32>,
    %9 = vector.extract_strided_slice %5 {offsets = [0, 128], sizes = [8, 128], strides = [1, 1]} : vector<8x384xf32> to vector<8x128xf32>
    %10 = arith.negf %9 : vector<8x128xf32>
    %11 = math.exp %10 : vector<8x128xf32>
    %cst_7 = arith.constant 1.000000e+00 : f32
    %12 = vector.broadcast %cst_7 : f32 to vector<8x128xf32>
    %13 = arith.addf %12, %11 : vector<8x128xf32>
    %14 = arith.divf %12, %13 : vector<8x128xf32>
    %c0_8 = arith.constant 0 : index
    %c0_9 = arith.constant 0 : index
    %15 = vector.load %arg5[%c0_8, %c0_9] : memref<8x128xf32, #tpu.memory_space<vmem>>, vector<8x128xf32>
    tpu.vector_store %arg5[%c0_8, %c0_9], %14 {strides = array<i32>} : memref<8x128xf32, #tpu.memory_space<vmem>>, vector<8x128xf32>,
    %16 = vector.extract_strided_slice %5 {offsets = [0, 256], sizes = [8, 128], strides = [1, 1]} : vector<8x384xf32> to vector<8x128xf32>
    %17 = arith.negf %16 : vector<8x128xf32>
    %18 = math.exp %17 : vector<8x128xf32>
    %cst_10 = arith.constant 1.000000e+00 : f32
    %19 = vector.broadcast %cst_10 : f32 to vector<8x128xf32>
    %20 = arith.addf %19, %18 : vector<8x128xf32>
    %21 = arith.divf %19, %20 : vector<8x128xf32>
    %c0_11 = arith.constant 0 : index
    %c0_12 = arith.constant 0 : index
    %22 = vector.load %arg6[%c0_11, %c0_12] : memref<8x128xf32, #tpu.memory_space<vmem>>, vector<8x128xf32>
    tpu.vector_store %arg6[%c0_11, %c0_12], %21 {strides = array<i32>} : memref<8x128xf32, #tpu.memory_space<vmem>>, vector<8x128xf32>,
    return
  }
  func.func @transform_0(%arg0: i32) -> (i32, i32) {
    %c0_i32 = arith.constant 0 : i32
    %c0_i32_0 = arith.constant 0 : i32
    return %arg0, %c0_i32 : i32, i32
  }
  func.func @transform_1(%arg0: i32) -> (i32, i32) {
    %c0_i32 = arith.constant 0 : i32
    %c0_i32_0 = arith.constant 0 : i32
    %c0_i32_1 = arith.constant 0 : i32
    return %c0_i32, %c0_i32_0 : i32, i32
  }
  func.func @transform_2(%arg0: i32) -> (i32, i32) {
    %c0_i32 = arith.constant 0 : i32
    %c0_i32_0 = arith.constant 0 : i32
    %c0_i32_1 = arith.constant 0 : i32
    return %c0_i32, %c0_i32_0 : i32, i32
  }
  func.func @transform_3(%arg0: i32) -> (i32, i32) {
    %c0_i32 = arith.constant 0 : i32
    %c0_i32_0 = arith.constant 0 : i32
    return %arg0, %c0_i32 : i32, i32
  }
  func.func @transform_4(%arg0: i32) -> (i32, i32) {
    %c0_i32 = arith.constant 0 : i32
    %c0_i32_0 = arith.constant 0 : i32
    return %arg0, %c0_i32 : i32, i32
  }
  func.func @transform_5(%arg0: i32) -> (i32, i32) {
    %c0_i32 = arith.constant 0 : i32
    %c0_i32_0 = arith.constant 0 : i32
    return %arg0, %c0_i32 : i32, i32
  }
}

module attributes {stable_mosaic.version = 11 : i64} {
  func.func @_forgetmult_kernel(%arg0: i32, %arg1: i32, %arg2: memref<8x2x128xf32, #tpu.memory_space<vmem>>, %arg3: memref<8x2x128xf32, #tpu.memory_space<vmem>>, %arg4: memref<8x2x128xf32, #tpu.memory_space<vmem>>, %arg5: memref<1x2x128xf32, #tpu.memory_space<vmem>>, %arg6: memref<8x2x128xf32, #tpu.memory_space<vmem>>, %arg7: memref<1x2x128xf32, #tpu.memory_space<vmem>>, %arg8: memref<2x128xf32, #tpu.memory_space<vmem>>) attributes {dimension_semantics = [#tpu.dimension_semantics<parallel>, #tpu.dimension_semantics<arbitrary>], iteration_bounds = array<i64: 1, 1>, scalar_prefetch = 0 : i64, scratch_operands = 1 : i64, tpu.core_type = #tpu.core_type<tc>, window_params = [{transform_indices = @transform_0, window_bounds = array<i64: 8, 2, 128>}, {transform_indices = @transform_1, window_bounds = array<i64: 8, 2, 128>}, {transform_indices = @transform_2, window_bounds = array<i64: 8, 2, 128>}, {transform_indices = @transform_3, window_bounds = array<i64: 1, 2, 128>}, {transform_indices = @transform_4, window_bounds = array<i64: 8, 2, 128>}, {transform_indices = @transform_5, window_bounds = array<i64: 1, 2, 128>}]} {
    %c0_i32 = arith.constant 0 : i32
    %0 = arith.cmpi eq, %arg1, %c0_i32 : i32
    %1 = arith.extui %0 : i1 to i32
    %c0_i32_0 = arith.constant 0 : i32
    %2 = arith.cmpi ne, %1, %c0_i32_0 : i32
    scf.if %2 {
      %c0_78 = arith.constant 0 : index
      %c0_79 = arith.constant 0 : index
      %c0_80 = arith.constant 0 : index
      %160 = vector.load %arg5[%c0_78, %c0_79, %c0_80] : memref<1x2x128xf32, #tpu.memory_space<vmem>>, vector<1x2x128xf32>
      %161 = vector.shape_cast %160 : vector<1x2x128xf32> to vector<2x128xf32>
      %c0_81 = arith.constant 0 : index
      %c0_82 = arith.constant 0 : index
      %162 = vector.load %arg8[%c0_81, %c0_82] : memref<2x128xf32, #tpu.memory_space<vmem>>, vector<2x128xf32>
      tpu.vector_store %arg8[%c0_81, %c0_82], %161 {strides = array<i32>} : memref<2x128xf32, #tpu.memory_space<vmem>>, vector<2x128xf32>,
    } else {
    }
    %c0 = arith.constant 0 : index
    %c0_1 = arith.constant 0 : index
    %3 = vector.load %arg8[%c0, %c0_1] : memref<2x128xf32, #tpu.memory_space<vmem>>, vector<2x128xf32>
    %c0_i32_2 = arith.constant 0 : i32
    %4 = arith.index_cast %c0_i32_2 : i32 to index
    %c0_3 = arith.constant 0 : index
    %c0_4 = arith.constant 0 : index
    %5 = vector.load %arg2[%4, %c0_3, %c0_4] : memref<8x2x128xf32, #tpu.memory_space<vmem>>, vector<1x2x128xf32>
    %6 = vector.shape_cast %5 : vector<1x2x128xf32> to vector<2x128xf32>
    %7 = arith.index_cast %c0_i32_2 : i32 to index
    %c0_5 = arith.constant 0 : index
    %c0_6 = arith.constant 0 : index
    %8 = vector.load %arg3[%7, %c0_5, %c0_6] : memref<8x2x128xf32, #tpu.memory_space<vmem>>, vector<1x2x128xf32>
    %9 = vector.shape_cast %8 : vector<1x2x128xf32> to vector<2x128xf32>
    %10 = arith.index_cast %c0_i32_2 : i32 to index
    %c0_7 = arith.constant 0 : index
    %c0_8 = arith.constant 0 : index
    %11 = vector.load %arg4[%10, %c0_7, %c0_8] : memref<8x2x128xf32, #tpu.memory_space<vmem>>, vector<1x2x128xf32>
    %12 = vector.shape_cast %11 : vector<1x2x128xf32> to vector<2x128xf32>
    %13 = arith.mulf %9, %6 : vector<2x128xf32>
    %cst = arith.constant 1.000000e+00 : f32
    %14 = vector.broadcast %cst : f32 to vector<2x128xf32>
    %15 = arith.subf %14, %9 : vector<2x128xf32>
    %16 = arith.mulf %15, %3 : vector<2x128xf32>
    %17 = arith.addf %13, %16 : vector<2x128xf32>
    %18 = arith.mulf %12, %17 : vector<2x128xf32>
    %19 = arith.index_cast %c0_i32_2 : i32 to index
    %c0_9 = arith.constant 0 : index
    %c0_10 = arith.constant 0 : index
    %20 = vector.load %arg6[%19, %c0_9, %c0_10] : memref<8x2x128xf32, #tpu.memory_space<vmem>>, vector<1x2x128xf32>
    %21 = vector.shape_cast %20 : vector<1x2x128xf32> to vector<2x128xf32>
    %22 = vector.shape_cast %18 : vector<2x128xf32> to vector<1x2x128xf32>
    tpu.vector_store %arg6[%19, %c0_9, %c0_10], %22 {strides = array<i32>} : memref<8x2x128xf32, #tpu.memory_space<vmem>>, vector<1x2x128xf32>,
    %c1_i32 = arith.constant 1 : i32
    %23 = arith.index_cast %c1_i32 : i32 to index
    %c0_11 = arith.constant 0 : index
    %c0_12 = arith.constant 0 : index
    %24 = vector.load %arg2[%23, %c0_11, %c0_12] : memref<8x2x128xf32, #tpu.memory_space<vmem>>, vector<1x2x128xf32>
    %25 = vector.shape_cast %24 : vector<1x2x128xf32> to vector<2x128xf32>
    %26 = arith.index_cast %c1_i32 : i32 to index
    %c0_13 = arith.constant 0 : index
    %c0_14 = arith.constant 0 : index
    %27 = vector.load %arg3[%26, %c0_13, %c0_14] : memref<8x2x128xf32, #tpu.memory_space<vmem>>, vector<1x2x128xf32>
    %28 = vector.shape_cast %27 : vector<1x2x128xf32> to vector<2x128xf32>
    %29 = arith.index_cast %c1_i32 : i32 to index
    %c0_15 = arith.constant 0 : index
    %c0_16 = arith.constant 0 : index
    %30 = vector.load %arg4[%29, %c0_15, %c0_16] : memref<8x2x128xf32, #tpu.memory_space<vmem>>, vector<1x2x128xf32>
    %31 = vector.shape_cast %30 : vector<1x2x128xf32> to vector<2x128xf32>
    %32 = arith.mulf %28, %25 : vector<2x128xf32>
    %cst_17 = arith.constant 1.000000e+00 : f32
    %33 = vector.broadcast %cst_17 : f32 to vector<2x128xf32>
    %34 = arith.subf %33, %28 : vector<2x128xf32>
    %35 = arith.mulf %34, %17 : vector<2x128xf32>
    %36 = arith.addf %32, %35 : vector<2x128xf32>
    %37 = arith.mulf %31, %36 : vector<2x128xf32>
    %38 = arith.index_cast %c1_i32 : i32 to index
    %c0_18 = arith.constant 0 : index
    %c0_19 = arith.constant 0 : index
    %39 = vector.load %arg6[%38, %c0_18, %c0_19] : memref<8x2x128xf32, #tpu.memory_space<vmem>>, vector<1x2x128xf32>
    %40 = vector.shape_cast %39 : vector<1x2x128xf32> to vector<2x128xf32>
    %41 = vector.shape_cast %37 : vector<2x128xf32> to vector<1x2x128xf32>
    tpu.vector_store %arg6[%38, %c0_18, %c0_19], %41 {strides = array<i32>} : memref<8x2x128xf32, #tpu.memory_space<vmem>>, vector<1x2x128xf32>,
    %c2_i32 = arith.constant 2 : i32
    %42 = arith.index_cast %c2_i32 : i32 to index
    %c0_20 = arith.constant 0 : index
    %c0_21 = arith.constant 0 : index
    %43 = vector.load %arg2[%42, %c0_20, %c0_21] : memref<8x2x128xf32, #tpu.memory_space<vmem>>, vector<1x2x128xf32>
    %44 = vector.shape_cast %43 : vector<1x2x128xf32> to vector<2x128xf32>
    %45 = arith.index_cast %c2_i32 : i32 to index
    %c0_22 = arith.constant 0 : index
    %c0_23 = arith.constant 0 : index
    %46 = vector.load %arg3[%45, %c0_22, %c0_23] : memref<8x2x128xf32, #tpu.memory_space<vmem>>, vector<1x2x128xf32>
    %47 = vector.shape_cast %46 : vector<1x2x128xf32> to vector<2x128xf32>
    %48 = arith.index_cast %c2_i32 : i32 to index
    %c0_24 = arith.constant 0 : index
    %c0_25 = arith.constant 0 : index
    %49 = vector.load %arg4[%48, %c0_24, %c0_25] : memref<8x2x128xf32, #tpu.memory_space<vmem>>, vector<1x2x128xf32>
    %50 = vector.shape_cast %49 : vector<1x2x128xf32> to vector<2x128xf32>
    %51 = arith.mulf %47, %44 : vector<2x128xf32>
    %cst_26 = arith.constant 1.000000e+00 : f32
    %52 = vector.broadcast %cst_26 : f32 to vector<2x128xf32>
    %53 = arith.subf %52, %47 : vector<2x128xf32>
    %54 = arith.mulf %53, %36 : vector<2x128xf32>
    %55 = arith.addf %51, %54 : vector<2x128xf32>
    %56 = arith.mulf %50, %55 : vector<2x128xf32>
    %57 = arith.index_cast %c2_i32 : i32 to index
    %c0_27 = arith.constant 0 : index
    %c0_28 = arith.constant 0 : index
    %58 = vector.load %arg6[%57, %c0_27, %c0_28] : memref<8x2x128xf32, #tpu.memory_space<vmem>>, vector<1x2x128xf32>
    %59 = vector.shape_cast %58 : vector<1x2x128xf32> to vector<2x128xf32>
    %60 = vector.shape_cast %56 : vector<2x128xf32> to vector<1x2x128xf32>
    tpu.vector_store %arg6[%57, %c0_27, %c0_28], %60 {strides = array<i32>} : memref<8x2x128xf32, #tpu.memory_space<vmem>>, vector<1x2x128xf32>,
    %c3_i32 = arith.constant 3 : i32
    %61 = arith.index_cast %c3_i32 : i32 to index
    %c0_29 = arith.constant 0 : index
    %c0_30 = arith.constant 0 : index
    %62 = vector.load %arg2[%61, %c0_29, %c0_30] : memref<8x2x128xf32, #tpu.memory_space<vmem>>, vector<1x2x128xf32>
    %63 = vector.shape_cast %62 : vector<1x2x128xf32> to vector<2x128xf32>
    %64 = arith.index_cast %c3_i32 : i32 to index
    %c0_31 = arith.constant 0 : index
    %c0_32 = arith.constant 0 : index
    %65 = vector.load %arg3[%64, %c0_31, %c0_32] : memref<8x2x128xf32, #tpu.memory_space<vmem>>, vector<1x2x128xf32>
    %66 = vector.shape_cast %65 : vector<1x2x128xf32> to vector<2x128xf32>
    %67 = arith.index_cast %c3_i32 : i32 to index
    %c0_33 = arith.constant 0 : index
    %c0_34 = arith.constant 0 : index
    %68 = vector.load %arg4[%67, %c0_33, %c0_34] : memref<8x2x128xf32, #tpu.memory_space<vmem>>, vector<1x2x128xf32>
    %69 = vector.shape_cast %68 : vector<1x2x128xf32> to vector<2x128xf32>
    %70 = arith.mulf %66, %63 : vector<2x128xf32>
    %cst_35 = arith.constant 1.000000e+00 : f32
    %71 = vector.broadcast %cst_35 : f32 to vector<2x128xf32>
    %72 = arith.subf %71, %66 : vector<2x128xf32>
    %73 = arith.mulf %72, %55 : vector<2x128xf32>
    %74 = arith.addf %70, %73 : vector<2x128xf32>
    %75 = arith.mulf %69, %74 : vector<2x128xf32>
    %76 = arith.index_cast %c3_i32 : i32 to index
    %c0_36 = arith.constant 0 : index
    %c0_37 = arith.constant 0 : index
    %77 = vector.load %arg6[%76, %c0_36, %c0_37] : memref<8x2x128xf32, #tpu.memory_space<vmem>>, vector<1x2x128xf32>
    %78 = vector.shape_cast %77 : vector<1x2x128xf32> to vector<2x128xf32>
    %79 = vector.shape_cast %75 : vector<2x128xf32> to vector<1x2x128xf32>
    tpu.vector_store %arg6[%76, %c0_36, %c0_37], %79 {strides = array<i32>} : memref<8x2x128xf32, #tpu.memory_space<vmem>>, vector<1x2x128xf32>,
    %c4_i32 = arith.constant 4 : i32
    %80 = arith.index_cast %c4_i32 : i32 to index
    %c0_38 = arith.constant 0 : index
    %c0_39 = arith.constant 0 : index
    %81 = vector.load %arg2[%80, %c0_38, %c0_39] : memref<8x2x128xf32, #tpu.memory_space<vmem>>, vector<1x2x128xf32>
    %82 = vector.shape_cast %81 : vector<1x2x128xf32> to vector<2x128xf32>
    %83 = arith.index_cast %c4_i32 : i32 to index
    %c0_40 = arith.constant 0 : index
    %c0_41 = arith.constant 0 : index
    %84 = vector.load %arg3[%83, %c0_40, %c0_41] : memref<8x2x128xf32, #tpu.memory_space<vmem>>, vector<1x2x128xf32>
    %85 = vector.shape_cast %84 : vector<1x2x128xf32> to vector<2x128xf32>
    %86 = arith.index_cast %c4_i32 : i32 to index
    %c0_42 = arith.constant 0 : index
    %c0_43 = arith.constant 0 : index
    %87 = vector.load %arg4[%86, %c0_42, %c0_43] : memref<8x2x128xf32, #tpu.memory_space<vmem>>, vector<1x2x128xf32>
    %88 = vector.shape_cast %87 : vector<1x2x128xf32> to vector<2x128xf32>
    %89 = arith.mulf %85, %82 : vector<2x128xf32>
    %cst_44 = arith.constant 1.000000e+00 : f32
    %90 = vector.broadcast %cst_44 : f32 to vector<2x128xf32>
    %91 = arith.subf %90, %85 : vector<2x128xf32>
    %92 = arith.mulf %91, %74 : vector<2x128xf32>
    %93 = arith.addf %89, %92 : vector<2x128xf32>
    %94 = arith.mulf %88, %93 : vector<2x128xf32>
    %95 = arith.index_cast %c4_i32 : i32 to index
    %c0_45 = arith.constant 0 : index
    %c0_46 = arith.constant 0 : index
    %96 = vector.load %arg6[%95, %c0_45, %c0_46] : memref<8x2x128xf32, #tpu.memory_space<vmem>>, vector<1x2x128xf32>
    %97 = vector.shape_cast %96 : vector<1x2x128xf32> to vector<2x128xf32>
    %98 = vector.shape_cast %94 : vector<2x128xf32> to vector<1x2x128xf32>
    tpu.vector_store %arg6[%95, %c0_45, %c0_46], %98 {strides = array<i32>} : memref<8x2x128xf32, #tpu.memory_space<vmem>>, vector<1x2x128xf32>,
    %c5_i32 = arith.constant 5 : i32
    %99 = arith.index_cast %c5_i32 : i32 to index
    %c0_47 = arith.constant 0 : index
    %c0_48 = arith.constant 0 : index
    %100 = vector.load %arg2[%99, %c0_47, %c0_48] : memref<8x2x128xf32, #tpu.memory_space<vmem>>, vector<1x2x128xf32>
    %101 = vector.shape_cast %100 : vector<1x2x128xf32> to vector<2x128xf32>
    %102 = arith.index_cast %c5_i32 : i32 to index
    %c0_49 = arith.constant 0 : index
    %c0_50 = arith.constant 0 : index
    %103 = vector.load %arg3[%102, %c0_49, %c0_50] : memref<8x2x128xf32, #tpu.memory_space<vmem>>, vector<1x2x128xf32>
    %104 = vector.shape_cast %103 : vector<1x2x128xf32> to vector<2x128xf32>
    %105 = arith.index_cast %c5_i32 : i32 to index
    %c0_51 = arith.constant 0 : index
    %c0_52 = arith.constant 0 : index
    %106 = vector.load %arg4[%105, %c0_51, %c0_52] : memref<8x2x128xf32, #tpu.memory_space<vmem>>, vector<1x2x128xf32>
    %107 = vector.shape_cast %106 : vector<1x2x128xf32> to vector<2x128xf32>
    %108 = arith.mulf %104, %101 : vector<2x128xf32>
    %cst_53 = arith.constant 1.000000e+00 : f32
    %109 = vector.broadcast %cst_53 : f32 to vector<2x128xf32>
    %110 = arith.subf %109, %104 : vector<2x128xf32>
    %111 = arith.mulf %110, %93 : vector<2x128xf32>
    %112 = arith.addf %108, %111 : vector<2x128xf32>
    %113 = arith.mulf %107, %112 : vector<2x128xf32>
    %114 = arith.index_cast %c5_i32 : i32 to index
    %c0_54 = arith.constant 0 : index
    %c0_55 = arith.constant 0 : index
    %115 = vector.load %arg6[%114, %c0_54, %c0_55] : memref<8x2x128xf32, #tpu.memory_space<vmem>>, vector<1x2x128xf32>
    %116 = vector.shape_cast %115 : vector<1x2x128xf32> to vector<2x128xf32>
    %117 = vector.shape_cast %113 : vector<2x128xf32> to vector<1x2x128xf32>
    tpu.vector_store %arg6[%114, %c0_54, %c0_55], %117 {strides = array<i32>} : memref<8x2x128xf32, #tpu.memory_space<vmem>>, vector<1x2x128xf32>,
    %c6_i32 = arith.constant 6 : i32
    %118 = arith.index_cast %c6_i32 : i32 to index
    %c0_56 = arith.constant 0 : index
    %c0_57 = arith.constant 0 : index
    %119 = vector.load %arg2[%118, %c0_56, %c0_57] : memref<8x2x128xf32, #tpu.memory_space<vmem>>, vector<1x2x128xf32>
    %120 = vector.shape_cast %119 : vector<1x2x128xf32> to vector<2x128xf32>
    %121 = arith.index_cast %c6_i32 : i32 to index
    %c0_58 = arith.constant 0 : index
    %c0_59 = arith.constant 0 : index
    %122 = vector.load %arg3[%121, %c0_58, %c0_59] : memref<8x2x128xf32, #tpu.memory_space<vmem>>, vector<1x2x128xf32>
    %123 = vector.shape_cast %122 : vector<1x2x128xf32> to vector<2x128xf32>
    %124 = arith.index_cast %c6_i32 : i32 to index
    %c0_60 = arith.constant 0 : index
    %c0_61 = arith.constant 0 : index
    %125 = vector.load %arg4[%124, %c0_60, %c0_61] : memref<8x2x128xf32, #tpu.memory_space<vmem>>, vector<1x2x128xf32>
    %126 = vector.shape_cast %125 : vector<1x2x128xf32> to vector<2x128xf32>
    %127 = arith.mulf %123, %120 : vector<2x128xf32>
    %cst_62 = arith.constant 1.000000e+00 : f32
    %128 = vector.broadcast %cst_62 : f32 to vector<2x128xf32>
    %129 = arith.subf %128, %123 : vector<2x128xf32>
    %130 = arith.mulf %129, %112 : vector<2x128xf32>
    %131 = arith.addf %127, %130 : vector<2x128xf32>
    %132 = arith.mulf %126, %131 : vector<2x128xf32>
    %133 = arith.index_cast %c6_i32 : i32 to index
    %c0_63 = arith.constant 0 : index
    %c0_64 = arith.constant 0 : index
    %134 = vector.load %arg6[%133, %c0_63, %c0_64] : memref<8x2x128xf32, #tpu.memory_space<vmem>>, vector<1x2x128xf32>
    %135 = vector.shape_cast %134 : vector<1x2x128xf32> to vector<2x128xf32>
    %136 = vector.shape_cast %132 : vector<2x128xf32> to vector<1x2x128xf32>
    tpu.vector_store %arg6[%133, %c0_63, %c0_64], %136 {strides = array<i32>} : memref<8x2x128xf32, #tpu.memory_space<vmem>>, vector<1x2x128xf32>,
    %c7_i32 = arith.constant 7 : i32
    %137 = arith.index_cast %c7_i32 : i32 to index
    %c0_65 = arith.constant 0 : index
    %c0_66 = arith.constant 0 : index
    %138 = vector.load %arg2[%137, %c0_65, %c0_66] : memref<8x2x128xf32, #tpu.memory_space<vmem>>, vector<1x2x128xf32>
    %139 = vector.shape_cast %138 : vector<1x2x128xf32> to vector<2x128xf32>
    %140 = arith.index_cast %c7_i32 : i32 to index
    %c0_67 = arith.constant 0 : index
    %c0_68 = arith.constant 0 : index
    %141 = vector.load %arg3[%140, %c0_67, %c0_68] : memref<8x2x128xf32, #tpu.memory_space<vmem>>, vector<1x2x128xf32>
    %142 = vector.shape_cast %141 : vector<1x2x128xf32> to vector<2x128xf32>
    %143 = arith.index_cast %c7_i32 : i32 to index
    %c0_69 = arith.constant 0 : index
    %c0_70 = arith.constant 0 : index
    %144 = vector.load %arg4[%143, %c0_69, %c0_70] : memref<8x2x128xf32, #tpu.memory_space<vmem>>, vector<1x2x128xf32>
    %145 = vector.shape_cast %144 : vector<1x2x128xf32> to vector<2x128xf32>
    %146 = arith.mulf %142, %139 : vector<2x128xf32>
    %cst_71 = arith.constant 1.000000e+00 : f32
    %147 = vector.broadcast %cst_71 : f32 to vector<2x128xf32>
    %148 = arith.subf %147, %142 : vector<2x128xf32>
    %149 = arith.mulf %148, %131 : vector<2x128xf32>
    %150 = arith.addf %146, %149 : vector<2x128xf32>
    %151 = arith.mulf %145, %150 : vector<2x128xf32>
    %152 = arith.index_cast %c7_i32 : i32 to index
    %c0_72 = arith.constant 0 : index
    %c0_73 = arith.constant 0 : index
    %153 = vector.load %arg6[%152, %c0_72, %c0_73] : memref<8x2x128xf32, #tpu.memory_space<vmem>>, vector<1x2x128xf32>
    %154 = vector.shape_cast %153 : vector<1x2x128xf32> to vector<2x128xf32>
    %155 = vector.shape_cast %151 : vector<2x128xf32> to vector<1x2x128xf32>
    tpu.vector_store %arg6[%152, %c0_72, %c0_73], %155 {strides = array<i32>} : memref<8x2x128xf32, #tpu.memory_space<vmem>>, vector<1x2x128xf32>,
    %c8_i32 = arith.constant 8 : i32
    %c0_74 = arith.constant 0 : index
    %c0_75 = arith.constant 0 : index
    %156 = vector.load %arg8[%c0_74, %c0_75] : memref<2x128xf32, #tpu.memory_space<vmem>>, vector<2x128xf32>
    tpu.vector_store %arg8[%c0_74, %c0_75], %150 {strides = array<i32>} : memref<2x128xf32, #tpu.memory_space<vmem>>, vector<2x128xf32>,
    %c0_i32_76 = arith.constant 0 : i32
    %157 = arith.cmpi eq, %arg1, %c0_i32_76 : i32
    %158 = arith.extui %157 : i1 to i32
    %c0_i32_77 = arith.constant 0 : i32
    %159 = arith.cmpi ne, %158, %c0_i32_77 : i32
    scf.if %159 {
      %c0_78 = arith.constant 0 : index
      %c0_79 = arith.constant 0 : index
      %c0_80 = arith.constant 0 : index
      %160 = vector.load %arg7[%c0_78, %c0_79, %c0_80] : memref<1x2x128xf32, #tpu.memory_space<vmem>>, vector<1x2x128xf32>
      %161 = vector.shape_cast %160 : vector<1x2x128xf32> to vector<2x128xf32>
      %162 = vector.shape_cast %150 : vector<2x128xf32> to vector<1x2x128xf32>
      tpu.vector_store %arg7[%c0_78, %c0_79, %c0_80], %162 {strides = array<i32>} : memref<1x2x128xf32, #tpu.memory_space<vmem>>, vector<1x2x128xf32>,
    } else {
    }
    return
  }
  func.func @transform_0(%arg0: i32, %arg1: i32) -> (i32, i32, i32) {
    %c0_i32 = arith.constant 0 : i32
    %c0_i32_0 = arith.constant 0 : i32
    return %arg1, %arg0, %c0_i32 : i32, i32, i32
  }
  func.func @transform_1(%arg0: i32, %arg1: i32) -> (i32, i32, i32) {
    %c0_i32 = arith.constant 0 : i32
    %c0_i32_0 = arith.constant 0 : i32
    return %arg1, %arg0, %c0_i32 : i32, i32, i32
  }
  func.func @transform_2(%arg0: i32, %arg1: i32) -> (i32, i32, i32) {
    %c0_i32 = arith.constant 0 : i32
    %c0_i32_0 = arith.constant 0 : i32
    return %arg1, %arg0, %c0_i32 : i32, i32, i32
  }
  func.func @transform_3(%arg0: i32, %arg1: i32) -> (i32, i32, i32) {
    %c0_i32 = arith.constant 0 : i32
    %c0_i32_0 = arith.constant 0 : i32
    %c0_i32_1 = arith.constant 0 : i32
    return %c0_i32, %arg0, %c0_i32_0 : i32, i32, i32
  }
  func.func @transform_4(%arg0: i32, %arg1: i32) -> (i32, i32, i32) {
    %c0_i32 = arith.constant 0 : i32
    %c0_i32_0 = arith.constant 0 : i32
    return %arg1, %arg0, %c0_i32 : i32, i32, i32
  }
  func.func @transform_5(%arg0: i32, %arg1: i32) -> (i32, i32, i32) {
    %c0_i32 = arith.constant 0 : i32
    %c0_i32_0 = arith.constant 0 : i32
    %c0_i32_1 = arith.constant 0 : i32
    return %c0_i32, %arg0, %c0_i32_0 : i32, i32, i32
  }
}

module attributes {stable_mosaic.version = 11 : i64} {
  func.func @_forgetmult_kernel(%arg0: i32, %arg1: i32, %arg2: memref<8x2x128xf32, #tpu.memory_space<vmem>>, %arg3: memref<8x2x128xf32, #tpu.memory_space<vmem>>, %arg4: memref<8x2x128xf32, #tpu.memory_space<vmem>>, %arg5: memref<1x2x128xf32, #tpu.memory_space<vmem>>, %arg6: memref<8x2x128xf32, #tpu.memory_space<vmem>>, %arg7: memref<1x2x128xf32, #tpu.memory_space<vmem>>, %arg8: memref<2x128xf32, #tpu.memory_space<vmem>>) attributes {dimension_semantics = [#tpu.dimension_semantics<parallel>, #tpu.dimension_semantics<arbitrary>], iteration_bounds = array<i64: 1, 1>, scalar_prefetch = 0 : i64, scratch_operands = 1 : i64, tpu.core_type = #tpu.core_type<tc>, window_params = [{transform_indices = @transform_0, window_bounds = array<i64: 8, 2, 128>}, {transform_indices = @transform_1, window_bounds = array<i64: 8, 2, 128>}, {transform_indices = @transform_2, window_bounds = array<i64: 8, 2, 128>}, {transform_indices = @transform_3, window_bounds = array<i64: 1, 2, 128>}, {transform_indices = @transform_4, window_bounds = array<i64: 8, 2, 128>}, {transform_indices = @transform_5, window_bounds = array<i64: 1, 2, 128>}]} {
    %c0_i32 = arith.constant 0 : i32
    %0 = arith.cmpi eq, %arg1, %c0_i32 : i32
    %1 = arith.extui %0 : i1 to i32
    %c0_i32_0 = arith.constant 0 : i32
    %2 = arith.cmpi ne, %1, %c0_i32_0 : i32
    scf.if %2 {
      %c0_78 = arith.constant 0 : index
      %c0_79 = arith.constant 0 : index
      %c0_80 = arith.constant 0 : index
      %160 = vector.load %arg5[%c0_78, %c0_79, %c0_80] : memref<1x2x128xf32, #tpu.memory_space<vmem>>, vector<1x2x128xf32>
      %161 = vector.shape_cast %160 : vector<1x2x128xf32> to vector<2x128xf32>
      %c0_81 = arith.constant 0 : index
      %c0_82 = arith.constant 0 : index
      %162 = vector.load %arg8[%c0_81, %c0_82] : memref<2x128xf32, #tpu.memory_space<vmem>>, vector<2x128xf32>
      tpu.vector_store %arg8[%c0_81, %c0_82], %161 {strides = array<i32>} : memref<2x128xf32, #tpu.memory_space<vmem>>, vector<2x128xf32>,
    } else {
    }
    %c0 = arith.constant 0 : index
    %c0_1 = arith.constant 0 : index
    %3 = vector.load %arg8[%c0, %c0_1] : memref<2x128xf32, #tpu.memory_space<vmem>>, vector<2x128xf32>
    %c0_i32_2 = arith.constant 0 : i32
    %4 = arith.index_cast %c0_i32_2 : i32 to index
    %c0_3 = arith.constant 0 : index
    %c0_4 = arith.constant 0 : index
    %5 = vector.load %arg2[%4, %c0_3, %c0_4] : memref<8x2x128xf32, #tpu.memory_space<vmem>>, vector<1x2x128xf32>
    %6 = vector.shape_cast %5 : vector<1x2x128xf32> to vector<2x128xf32>
    %7 = arith.index_cast %c0_i32_2 : i32 to index
    %c0_5 = arith.constant 0 : index
    %c0_6 = arith.constant 0 : index
    %8 = vector.load %arg3[%7, %c0_5, %c0_6] : memref<8x2x128xf32, #tpu.memory_space<vmem>>, vector<1x2x128xf32>
    %9 = vector.shape_cast %8 : vector<1x2x128xf32> to vector<2x128xf32>
    %10 = arith.index_cast %c0_i32_2 : i32 to index
    %c0_7 = arith.constant 0 : index
    %c0_8 = arith.constant 0 : index
    %11 = vector.load %arg4[%10, %c0_7, %c0_8] : memref<8x2x128xf32, #tpu.memory_space<vmem>>, vector<1x2x128xf32>
    %12 = vector.shape_cast %11 : vector<1x2x128xf32> to vector<2x128xf32>
    %13 = arith.mulf %9, %6 : vector<2x128xf32>
    %cst = arith.constant 1.000000e+00 : f32
    %14 = vector.broadcast %cst : f32 to vector<2x128xf32>
    %15 = arith.subf %14, %9 : vector<2x128xf32>
    %16 = arith.mulf %15, %3 : vector<2x128xf32>
    %17 = arith.addf %13, %16 : vector<2x128xf32>
    %18 = arith.mulf %12, %17 : vector<2x128xf32>
    %19 = arith.index_cast %c0_i32_2 : i32 to index
    %c0_9 = arith.constant 0 : index
    %c0_10 = arith.constant 0 : index
    %20 = vector.load %arg6[%19, %c0_9, %c0_10] : memref<8x2x128xf32, #tpu.memory_space<vmem>>, vector<1x2x128xf32>
    %21 = vector.shape_cast %20 : vector<1x2x128xf32> to vector<2x128xf32>
    %22 = vector.shape_cast %18 : vector<2x128xf32> to vector<1x2x128xf32>
    tpu.vector_store %arg6[%19, %c0_9, %c0_10], %22 {strides = array<i32>} : memref<8x2x128xf32, #tpu.memory_space<vmem>>, vector<1x2x128xf32>,
    %c1_i32 = arith.constant 1 : i32
    %23 = arith.index_cast %c1_i32 : i32 to index
    %c0_11 = arith.constant 0 : index
    %c0_12 = arith.constant 0 : index
    %24 = vector.load %arg2[%23, %c0_11, %c0_12] : memref<8x2x128xf32, #tpu.memory_space<vmem>>, vector<1x2x128xf32>
    %25 = vector.shape_cast %24 : vector<1x2x128xf32> to vector<2x128xf32>
    %26 = arith.index_cast %c1_i32 : i32 to index
    %c0_13 = arith.constant 0 : index
    %c0_14 = arith.constant 0 : index
    %27 = vector.load %arg3[%26, %c0_13, %c0_14] : memref<8x2x128xf32, #tpu.memory_space<vmem>>, vector<1x2x128xf32>
    %28 = vector.shape_cast %27 : vector<1x2x128xf32> to vector<2x128xf32>
    %29 = arith.index_cast %c1_i32 : i32 to index
    %c0_15 = arith.constant 0 : index
    %c0_16 = arith.constant 0 : index
    %30 = vector.load %arg4[%29, %c0_15, %c0_16] : memref<8x2x128xf32, #tpu.memory_space<vmem>>, vector<1x2x128xf32>
    %31 = vector.shape_cast %30 : vector<1x2x128xf32> to vector<2x128xf32>
    %32 = arith.mulf %28, %25 : vector<2x128xf32>
    %cst_17 = arith.constant 1.000000e+00 : f32
    %33 = vector.broadcast %cst_17 : f32 to vector<2x128xf32>
    %34 = arith.subf %33, %28 : vector<2x128xf32>
    %35 = arith.mulf %34, %17 : vector<2x128xf32>
    %36 = arith.addf %32, %35 : vector<2x128xf32>
    %37 = arith.mulf %31, %36 : vector<2x128xf32>
    %38 = arith.index_cast %c1_i32 : i32 to index
    %c0_18 = arith.constant 0 : index
    %c0_19 = arith.constant 0 : index
    %39 = vector.load %arg6[%38, %c0_18, %c0_19] : memref<8x2x128xf32, #tpu.memory_space<vmem>>, vector<1x2x128xf32>
    %40 = vector.shape_cast %39 : vector<1x2x128xf32> to vector<2x128xf32>
    %41 = vector.shape_cast %37 : vector<2x128xf32> to vector<1x2x128xf32>
    tpu.vector_store %arg6[%38, %c0_18, %c0_19], %41 {strides = array<i32>} : memref<8x2x128xf32, #tpu.memory_space<vmem>>, vector<1x2x128xf32>,
    %c2_i32 = arith.constant 2 : i32
    %42 = arith.index_cast %c2_i32 : i32 to index
    %c0_20 = arith.constant 0 : index
    %c0_21 = arith.constant 0 : index
    %43 = vector.load %arg2[%42, %c0_20, %c0_21] : memref<8x2x128xf32, #tpu.memory_space<vmem>>, vector<1x2x128xf32>
    %44 = vector.shape_cast %43 : vector<1x2x128xf32> to vector<2x128xf32>
    %45 = arith.index_cast %c2_i32 : i32 to index
    %c0_22 = arith.constant 0 : index
    %c0_23 = arith.constant 0 : index
    %46 = vector.load %arg3[%45, %c0_22, %c0_23] : memref<8x2x128xf32, #tpu.memory_space<vmem>>, vector<1x2x128xf32>
    %47 = vector.shape_cast %46 : vector<1x2x128xf32> to vector<2x128xf32>
    %48 = arith.index_cast %c2_i32 : i32 to index
    %c0_24 = arith.constant 0 : index
    %c0_25 = arith.constant 0 : index
    %49 = vector.load %arg4[%48, %c0_24, %c0_25] : memref<8x2x128xf32, #tpu.memory_space<vmem>>, vector<1x2x128xf32>
    %50 = vector.shape_cast %49 : vector<1x2x128xf32> to vector<2x128xf32>
    %51 = arith.mulf %47, %44 : vector<2x128xf32>
    %cst_26 = arith.constant 1.000000e+00 : f32
    %52 = vector.broadcast %cst_26 : f32 to vector<2x128xf32>
    %53 = arith.subf %52, %47 : vector<2x128xf32>
    %54 = arith.mulf %53, %36 : vector<2x128xf32>
    %55 = arith.addf %51, %54 : vector<2x128xf32>
    %56 = arith.mulf %50, %55 : vector<2x128xf32>
    %57 = arith.index_cast %c2_i32 : i32 to index
    %c0_27 = arith.constant 0 : index
    %c0_28 = arith.constant 0 : index
    %58 = vector.load %arg6[%57, %c0_27, %c0_28] : memref<8x2x128xf32, #tpu.memory_space<vmem>>, vector<1x2x128xf32>
    %59 = vector.shape_cast %58 : vector<1x2x128xf32> to vector<2x128xf32>
    %60 = vector.shape_cast %56 : vector<2x128xf32> to vector<1x2x128xf32>
    tpu.vector_store %arg6[%57, %c0_27, %c0_28], %60 {strides = array<i32>} : memref<8x2x128xf32, #tpu.memory_space<vmem>>, vector<1x2x128xf32>,
    %c3_i32 = arith.constant 3 : i32
    %61 = arith.index_cast %c3_i32 : i32 to index
    %c0_29 = arith.constant 0 : index
    %c0_30 = arith.constant 0 : index
    %62 = vector.load %arg2[%61, %c0_29, %c0_30] : memref<8x2x128xf32, #tpu.memory_space<vmem>>, vector<1x2x128xf32>
    %63 = vector.shape_cast %62 : vector<1x2x128xf32> to vector<2x128xf32>
    %64 = arith.index_cast %c3_i32 : i32 to index
    %c0_31 = arith.constant 0 : index
    %c0_32 = arith.constant 0 : index
    %65 = vector.load %arg3[%64, %c0_31, %c0_32] : memref<8x2x128xf32, #tpu.memory_space<vmem>>, vector<1x2x128xf32>
    %66 = vector.shape_cast %65 : vector<1x2x128xf32> to vector<2x128xf32>
    %67 = arith.index_cast %c3_i32 : i32 to index
    %c0_33 = arith.constant 0 : index
    %c0_34 = arith.constant 0 : index
    %68 = vector.load %arg4[%67, %c0_33, %c0_34] : memref<8x2x128xf32, #tpu.memory_space<vmem>>, vector<1x2x128xf32>
    %69 = vector.shape_cast %68 : vector<1x2x128xf32> to vector<2x128xf32>
    %70 = arith.mulf %66, %63 : vector<2x128xf32>
    %cst_35 = arith.constant 1.000000e+00 : f32
    %71 = vector.broadcast %cst_35 : f32 to vector<2x128xf32>
    %72 = arith.subf %71, %66 : vector<2x128xf32>
    %73 = arith.mulf %72, %55 : vector<2x128xf32>
    %74 = arith.addf %70, %73 : vector<2x128xf32>
    %75 = arith.mulf %69, %74 : vector<2x128xf32>
    %76 = arith.index_cast %c3_i32 : i32 to index
    %c0_36 = arith.constant 0 : index
    %c0_37 = arith.constant 0 : index
    %77 = vector.load %arg6[%76, %c0_36, %c0_37] : memref<8x2x128xf32, #tpu.memory_space<vmem>>, vector<1x2x128xf32>
    %78 = vector.shape_cast %77 : vector<1x2x128xf32> to vector<2x128xf32>
    %79 = vector.shape_cast %75 : vector<2x128xf32> to vector<1x2x128xf32>
    tpu.vector_store %arg6[%76, %c0_36, %c0_37], %79 {strides = array<i32>} : memref<8x2x128xf32, #tpu.memory_space<vmem>>, vector<1x2x128xf32>,
    %c4_i32 = arith.constant 4 : i32
    %80 = arith.index_cast %c4_i32 : i32 to index
    %c0_38 = arith.constant 0 : index
    %c0_39 = arith.constant 0 : index
    %81 = vector.load %arg2[%80, %c0_38, %c0_39] : memref<8x2x128xf32, #tpu.memory_space<vmem>>, vector<1x2x128xf32>
    %82 = vector.shape_cast %81 : vector<1x2x128xf32> to vector<2x128xf32>
    %83 = arith.index_cast %c4_i32 : i32 to index
    %c0_40 = arith.constant 0 : index
    %c0_41 = arith.constant 0 : index
    %84 = vector.load %arg3[%83, %c0_40, %c0_41] : memref<8x2x128xf32, #tpu.memory_space<vmem>>, vector<1x2x128xf32>
    %85 = vector.shape_cast %84 : vector<1x2x128xf32> to vector<2x128xf32>
    %86 = arith.index_cast %c4_i32 : i32 to index
    %c0_42 = arith.constant 0 : index
    %c0_43 = arith.constant 0 : index
    %87 = vector.load %arg4[%86, %c0_42, %c0_43] : memref<8x2x128xf32, #tpu.memory_space<vmem>>, vector<1x2x128xf32>
    %88 = vector.shape_cast %87 : vector<1x2x128xf32> to vector<2x128xf32>
    %89 = arith.mulf %85, %82 : vector<2x128xf32>
    %cst_44 = arith.constant 1.000000e+00 : f32
    %90 = vector.broadcast %cst_44 : f32 to vector<2x128xf32>
    %91 = arith.subf %90, %85 : vector<2x128xf32>
    %92 = arith.mulf %91, %74 : vector<2x128xf32>
    %93 = arith.addf %89, %92 : vector<2x128xf32>
    %94 = arith.mulf %88, %93 : vector<2x128xf32>
    %95 = arith.index_cast %c4_i32 : i32 to index
    %c0_45 = arith.constant 0 : index
    %c0_46 = arith.constant 0 : index
    %96 = vector.load %arg6[%95, %c0_45, %c0_46] : memref<8x2x128xf32, #tpu.memory_space<vmem>>, vector<1x2x128xf32>
    %97 = vector.shape_cast %96 : vector<1x2x128xf32> to vector<2x128xf32>
    %98 = vector.shape_cast %94 : vector<2x128xf32> to vector<1x2x128xf32>
    tpu.vector_store %arg6[%95, %c0_45, %c0_46], %98 {strides = array<i32>} : memref<8x2x128xf32, #tpu.memory_space<vmem>>, vector<1x2x128xf32>,
    %c5_i32 = arith.constant 5 : i32
    %99 = arith.index_cast %c5_i32 : i32 to index
    %c0_47 = arith.constant 0 : index
    %c0_48 = arith.constant 0 : index
    %100 = vector.load %arg2[%99, %c0_47, %c0_48] : memref<8x2x128xf32, #tpu.memory_space<vmem>>, vector<1x2x128xf32>
    %101 = vector.shape_cast %100 : vector<1x2x128xf32> to vector<2x128xf32>
    %102 = arith.index_cast %c5_i32 : i32 to index
    %c0_49 = arith.constant 0 : index
    %c0_50 = arith.constant 0 : index
    %103 = vector.load %arg3[%102, %c0_49, %c0_50] : memref<8x2x128xf32, #tpu.memory_space<vmem>>, vector<1x2x128xf32>
    %104 = vector.shape_cast %103 : vector<1x2x128xf32> to vector<2x128xf32>
    %105 = arith.index_cast %c5_i32 : i32 to index
    %c0_51 = arith.constant 0 : index
    %c0_52 = arith.constant 0 : index
    %106 = vector.load %arg4[%105, %c0_51, %c0_52] : memref<8x2x128xf32, #tpu.memory_space<vmem>>, vector<1x2x128xf32>
    %107 = vector.shape_cast %106 : vector<1x2x128xf32> to vector<2x128xf32>
    %108 = arith.mulf %104, %101 : vector<2x128xf32>
    %cst_53 = arith.constant 1.000000e+00 : f32
    %109 = vector.broadcast %cst_53 : f32 to vector<2x128xf32>
    %110 = arith.subf %109, %104 : vector<2x128xf32>
    %111 = arith.mulf %110, %93 : vector<2x128xf32>
    %112 = arith.addf %108, %111 : vector<2x128xf32>
    %113 = arith.mulf %107, %112 : vector<2x128xf32>
    %114 = arith.index_cast %c5_i32 : i32 to index
    %c0_54 = arith.constant 0 : index
    %c0_55 = arith.constant 0 : index
    %115 = vector.load %arg6[%114, %c0_54, %c0_55] : memref<8x2x128xf32, #tpu.memory_space<vmem>>, vector<1x2x128xf32>
    %116 = vector.shape_cast %115 : vector<1x2x128xf32> to vector<2x128xf32>
    %117 = vector.shape_cast %113 : vector<2x128xf32> to vector<1x2x128xf32>
    tpu.vector_store %arg6[%114, %c0_54, %c0_55], %117 {strides = array<i32>} : memref<8x2x128xf32, #tpu.memory_space<vmem>>, vector<1x2x128xf32>,
    %c6_i32 = arith.constant 6 : i32
    %118 = arith.index_cast %c6_i32 : i32 to index
    %c0_56 = arith.constant 0 : index
    %c0_57 = arith.constant 0 : index
    %119 = vector.load %arg2[%118, %c0_56, %c0_57] : memref<8x2x128xf32, #tpu.memory_space<vmem>>, vector<1x2x128xf32>
    %120 = vector.shape_cast %119 : vector<1x2x128xf32> to vector<2x128xf32>
    %121 = arith.index_cast %c6_i32 : i32 to index
    %c0_58 = arith.constant 0 : index
    %c0_59 = arith.constant 0 : index
    %122 = vector.load %arg3[%121, %c0_58, %c0_59] : memref<8x2x128xf32, #tpu.memory_space<vmem>>, vector<1x2x128xf32>
    %123 = vector.shape_cast %122 : vector<1x2x128xf32> to vector<2x128xf32>
    %124 = arith.index_cast %c6_i32 : i32 to index
    %c0_60 = arith.constant 0 : index
    %c0_61 = arith.constant 0 : index
    %125 = vector.load %arg4[%124, %c0_60, %c0_61] : memref<8x2x128xf32, #tpu.memory_space<vmem>>, vector<1x2x128xf32>
    %126 = vector.shape_cast %125 : vector<1x2x128xf32> to vector<2x128xf32>
    %127 = arith.mulf %123, %120 : vector<2x128xf32>
    %cst_62 = arith.constant 1.000000e+00 : f32
    %128 = vector.broadcast %cst_62 : f32 to vector<2x128xf32>
    %129 = arith.subf %128, %123 : vector<2x128xf32>
    %130 = arith.mulf %129, %112 : vector<2x128xf32>
    %131 = arith.addf %127, %130 : vector<2x128xf32>
    %132 = arith.mulf %126, %131 : vector<2x128xf32>
    %133 = arith.index_cast %c6_i32 : i32 to index
    %c0_63 = arith.constant 0 : index
    %c0_64 = arith.constant 0 : index
    %134 = vector.load %arg6[%133, %c0_63, %c0_64] : memref<8x2x128xf32, #tpu.memory_space<vmem>>, vector<1x2x128xf32>
    %135 = vector.shape_cast %134 : vector<1x2x128xf32> to vector<2x128xf32>
    %136 = vector.shape_cast %132 : vector<2x128xf32> to vector<1x2x128xf32>
    tpu.vector_store %arg6[%133, %c0_63, %c0_64], %136 {strides = array<i32>} : memref<8x2x128xf32, #tpu.memory_space<vmem>>, vector<1x2x128xf32>,
    %c7_i32 = arith.constant 7 : i32
    %137 = arith.index_cast %c7_i32 : i32 to index
    %c0_65 = arith.constant 0 : index
    %c0_66 = arith.constant 0 : index
    %138 = vector.load %arg2[%137, %c0_65, %c0_66] : memref<8x2x128xf32, #tpu.memory_space<vmem>>, vector<1x2x128xf32>
    %139 = vector.shape_cast %138 : vector<1x2x128xf32> to vector<2x128xf32>
    %140 = arith.index_cast %c7_i32 : i32 to index
    %c0_67 = arith.constant 0 : index
    %c0_68 = arith.constant 0 : index
    %141 = vector.load %arg3[%140, %c0_67, %c0_68] : memref<8x2x128xf32, #tpu.memory_space<vmem>>, vector<1x2x128xf32>
    %142 = vector.shape_cast %141 : vector<1x2x128xf32> to vector<2x128xf32>
    %143 = arith.index_cast %c7_i32 : i32 to index
    %c0_69 = arith.constant 0 : index
    %c0_70 = arith.constant 0 : index
    %144 = vector.load %arg4[%143, %c0_69, %c0_70] : memref<8x2x128xf32, #tpu.memory_space<vmem>>, vector<1x2x128xf32>
    %145 = vector.shape_cast %144 : vector<1x2x128xf32> to vector<2x128xf32>
    %146 = arith.mulf %142, %139 : vector<2x128xf32>
    %cst_71 = arith.constant 1.000000e+00 : f32
    %147 = vector.broadcast %cst_71 : f32 to vector<2x128xf32>
    %148 = arith.subf %147, %142 : vector<2x128xf32>
    %149 = arith.mulf %148, %131 : vector<2x128xf32>
    %150 = arith.addf %146, %149 : vector<2x128xf32>
    %151 = arith.mulf %145, %150 : vector<2x128xf32>
    %152 = arith.index_cast %c7_i32 : i32 to index
    %c0_72 = arith.constant 0 : index
    %c0_73 = arith.constant 0 : index
    %153 = vector.load %arg6[%152, %c0_72, %c0_73] : memref<8x2x128xf32, #tpu.memory_space<vmem>>, vector<1x2x128xf32>
    %154 = vector.shape_cast %153 : vector<1x2x128xf32> to vector<2x128xf32>
    %155 = vector.shape_cast %151 : vector<2x128xf32> to vector<1x2x128xf32>
    tpu.vector_store %arg6[%152, %c0_72, %c0_73], %155 {strides = array<i32>} : memref<8x2x128xf32, #tpu.memory_space<vmem>>, vector<1x2x128xf32>,
    %c8_i32 = arith.constant 8 : i32
    %c0_74 = arith.constant 0 : index
    %c0_75 = arith.constant 0 : index
    %156 = vector.load %arg8[%c0_74, %c0_75] : memref<2x128xf32, #tpu.memory_space<vmem>>, vector<2x128xf32>
    tpu.vector_store %arg8[%c0_74, %c0_75], %150 {strides = array<i32>} : memref<2x128xf32, #tpu.memory_space<vmem>>, vector<2x128xf32>,
    %c0_i32_76 = arith.constant 0 : i32
    %157 = arith.cmpi eq, %arg1, %c0_i32_76 : i32
    %158 = arith.extui %157 : i1 to i32
    %c0_i32_77 = arith.constant 0 : i32
    %159 = arith.cmpi ne, %158, %c0_i32_77 : i32
    scf.if %159 {
      %c0_78 = arith.constant 0 : index
      %c0_79 = arith.constant 0 : index
      %c0_80 = arith.constant 0 : index
      %160 = vector.load %arg7[%c0_78, %c0_79, %c0_80] : memref<1x2x128xf32, #tpu.memory_space<vmem>>, vector<1x2x128xf32>
      %161 = vector.shape_cast %160 : vector<1x2x128xf32> to vector<2x128xf32>
      %162 = vector.shape_cast %150 : vector<2x128xf32> to vector<1x2x128xf32>
      tpu.vector_store %arg7[%c0_78, %c0_79, %c0_80], %162 {strides = array<i32>} : memref<1x2x128xf32, #tpu.memory_space<vmem>>, vector<1x2x128xf32>,
    } else {
    }
    return
  }
  func.func @transform_0(%arg0: i32, %arg1: i32) -> (i32, i32, i32) {
    %c0_i32 = arith.constant 0 : i32
    %c0_i32_0 = arith.constant 0 : i32
    return %arg1, %arg0, %c0_i32 : i32, i32, i32
  }
  func.func @transform_1(%arg0: i32, %arg1: i32) -> (i32, i32, i32) {
    %c0_i32 = arith.constant 0 : i32
    %c0_i32_0 = arith.constant 0 : i32
    return %arg1, %arg0, %c0_i32 : i32, i32, i32
  }
  func.func @transform_2(%arg0: i32, %arg1: i32) -> (i32, i32, i32) {
    %c0_i32 = arith.constant 0 : i32
    %c0_i32_0 = arith.constant 0 : i32
    return %arg1, %arg0, %c0_i32 : i32, i32, i32
  }
  func.func @transform_3(%arg0: i32, %arg1: i32) -> (i32, i32, i32) {
    %c0_i32 = arith.constant 0 : i32
    %c0_i32_0 = arith.constant 0 : i32
    %c0_i32_1 = arith.constant 0 : i32
    return %c0_i32, %arg0, %c0_i32_0 : i32, i32, i32
  }
  func.func @transform_4(%arg0: i32, %arg1: i32) -> (i32, i32, i32) {
    %c0_i32 = arith.constant 0 : i32
    %c0_i32_0 = arith.constant 0 : i32
    return %arg1, %arg0, %c0_i32 : i32, i32, i32
  }
  func.func @transform_5(%arg0: i32, %arg1: i32) -> (i32, i32, i32) {
    %c0_i32 = arith.constant 0 : i32
    %c0_i32_0 = arith.constant 0 : i32
    %c0_i32_1 = arith.constant 0 : i32
    return %c0_i32, %arg0, %c0_i32_0 : i32, i32, i32
  }
}

module attributes {stable_mosaic.version = 11 : i64} {
  func.func @_proj_gates_single_k_kernel(%arg0: i32, %arg1: memref<8x32xf32, #tpu.memory_space<vmem>>, %arg2: memref<32x384xf32, #tpu.memory_space<vmem>>, %arg3: memref<1x384xf32, #tpu.memory_space<vmem>>, %arg4: memref<8x128xf32, #tpu.memory_space<vmem>>, %arg5: memref<8x128xf32, #tpu.memory_space<vmem>>, %arg6: memref<8x128xf32, #tpu.memory_space<vmem>>) attributes {dimension_semantics = [#tpu.dimension_semantics<parallel>], iteration_bounds = array<i64: 2>, scalar_prefetch = 0 : i64, scratch_operands = 0 : i64, tpu.core_type = #tpu.core_type<tc>, window_params = [{transform_indices = @transform_0, window_bounds = array<i64: 8, 32>}, {pipeline_mode = #tpu.pipeline_mode<synchronous>, transform_indices = @transform_1, window_bounds = array<i64: 32, 384>}, {pipeline_mode = #tpu.pipeline_mode<synchronous>, transform_indices = @transform_2, window_bounds = array<i64: 1, 384>}, {transform_indices = @transform_3, window_bounds = array<i64: 8, 128>}, {transform_indices = @transform_4, window_bounds = array<i64: 8, 128>}, {transform_indices = @transform_5, window_bounds = array<i64: 8, 128>}]} {
    %c0 = arith.constant 0 : index
    %c0_0 = arith.constant 0 : index
    %0 = vector.load %arg1[%c0, %c0_0] : memref<8x32xf32, #tpu.memory_space<vmem>>, vector<8x32xf32>
    %c0_1 = arith.constant 0 : index
    %c0_2 = arith.constant 0 : index
    %1 = vector.load %arg2[%c0_1, %c0_2] : memref<32x384xf32, #tpu.memory_space<vmem>>, vector<32x384xf32>
    %cst = arith.constant dense<0.000000e+00> : vector<8x384xf32>
    %2 = tpu.matmul %0, %1, %cst {dimension_numbers = #tpu.dot_dimension_numbers<[1], [0], [0], [1], [0, 0, 1, 1], [], []>} : vector<8x32xf32>, vector<32x384xf32>, vector<8x384xf32> -> vector<8x384xf32>
    %c0_3 = arith.constant 0 : index
    %c0_4 = arith.constant 0 : index
    %3 = vector.load %arg3[%c0_3, %c0_4] : memref<1x384xf32, #tpu.memory_space<vmem>>, vector<1x384xf32>
    %4 = vector.broadcast %3 : vector<1x384xf32> to vector<8x384xf32>
    %5 = arith.addf %2, %4 : vector<8x384xf32>
    %6 = vector.extract_strided_slice %5 {offsets = [0, 0], sizes = [8, 128], strides = [1, 1]} : vector<8x384xf32> to vector<8x128xf32>
    %7 = math.tanh %6 : vector<8x128xf32>
    %c0_5 = arith.constant 0 : index
    %c0_6 = arith.constant 0 : index
    %8 = vector.load %arg4[%c0_5, %c0_6] : memref<8x128xf32, #tpu.memory_space<vmem>>, vector<8x128xf32>
    tpu.vector_store %arg4[%c0_5, %c0_6], %7 {strides = array<i32>} : memref<8x128xf32, #tpu.memory_space<vmem>>, vector<8x128xf32>,
    %9 = vector.extract_strided_slice %5 {offsets = [0, 128], sizes = [8, 128], strides = [1, 1]} : vector<8x384xf32> to vector<8x128xf32>
    %10 = arith.negf %9 : vector<8x128xf32>
    %11 = math.exp %10 : vector<8x128xf32>
    %cst_7 = arith.constant 1.000000e+00 : f32
    %12 = vector.broadcast %cst_7 : f32 to vector<8x128xf32>
    %13 = arith.addf %12, %11 : vector<8x128xf32>
    %14 = arith.divf %12, %13 : vector<8x128xf32>
    %c0_8 = arith.constant 0 : index
    %c0_9 = arith.constant 0 : index
    %15 = vector.load %arg5[%c0_8, %c0_9] : memref<8x128xf32, #tpu.memory_space<vmem>>, vector<8x128xf32>
    tpu.vector_store %arg5[%c0_8, %c0_9], %14 {strides = array<i32>} : memref<8x128xf32, #tpu.memory_space<vmem>>, vector<8x128xf32>,
    %16 = vector.extract_strided_slice %5 {offsets = [0, 256], sizes = [8, 128], strides = [1, 1]} : vector<8x384xf32> to vector<8x128xf32>
    %17 = arith.negf %16 : vector<8x128xf32>
    %18 = math.exp %17 : vector<8x128xf32>
    %cst_10 = arith.constant 1.000000e+00 : f32
    %19 = vector.broadcast %cst_10 : f32 to vector<8x128xf32>
    %20 = arith.addf %19, %18 : vector<8x128xf32>
    %21 = arith.divf %19, %20 : vector<8x128xf32>
    %c0_11 = arith.constant 0 : index
    %c0_12 = arith.constant 0 : index
    %22 = vector.load %arg6[%c0_11, %c0_12] : memref<8x128xf32, #tpu.memory_space<vmem>>, vector<8x128xf32>
    tpu.vector_store %arg6[%c0_11, %c0_12], %21 {strides = array<i32>} : memref<8x128xf32, #tpu.memory_space<vmem>>, vector<8x128xf32>,
    return
  }
  func.func @transform_0(%arg0: i32) -> (i32, i32) {
    %c0_i32 = arith.constant 0 : i32
    %c0_i32_0 = arith.constant 0 : i32
    return %arg0, %c0_i32 : i32, i32
  }
  func.func @transform_1(%arg0: i32) -> (i32, i32) {
    %c0_i32 = arith.constant 0 : i32
    %c0_i32_0 = arith.constant 0 : i32
    %c0_i32_1 = arith.constant 0 : i32
    return %c0_i32, %c0_i32_0 : i32, i32
  }
  func.func @transform_2(%arg0: i32) -> (i32, i32) {
    %c0_i32 = arith.constant 0 : i32
    %c0_i32_0 = arith.constant 0 : i32
    %c0_i32_1 = arith.constant 0 : i32
    return %c0_i32, %c0_i32_0 : i32, i32
  }
  func.func @transform_3(%arg0: i32) -> (i32, i32) {
    %c0_i32 = arith.constant 0 : i32
    %c0_i32_0 = arith.constant 0 : i32
    return %arg0, %c0_i32 : i32, i32
  }
  func.func @transform_4(%arg0: i32) -> (i32, i32) {
    %c0_i32 = arith.constant 0 : i32
    %c0_i32_0 = arith.constant 0 : i32
    return %arg0, %c0_i32 : i32, i32
  }
  func.func @transform_5(%arg0: i32) -> (i32, i32) {
    %c0_i32 = arith.constant 0 : i32
    %c0_i32_0 = arith.constant 0 : i32
    return %arg0, %c0_i32 : i32, i32
  }
}

</mosaic_0001>

<llo_original>
// kernel: qrnn_forward.4
$region0: #{qrnn_forward.4}
  #allocation0 [shape = 'u32[]', space=smem, size = 0x4, offset = 0x4, fixed_abs, tag = 'smem constant byte address 0x4 - core index']
  #allocation1 [shape = 'u32[144,128]{1,0:T(1,128)}', space=vmem, size = 0x12000, scoped, tag = 'internal scratch']
  %s0 = inlined_call_operand.vmem [shape: f32[16,16], index: 0, kind: input, shape index: {}]
  %s1 = inlined_call_operand.vmem [shape: f32[16,384], index: 1, kind: input, shape index: {}]
  %s2 = inlined_call_operand.vmem [shape: f32[1,384], index: 2, kind: input, shape index: {}]
  %s3 = inlined_call_operand.vmem [shape: f32[16,128], index: 3, kind: output, shape index: {0}]
  %s4 = inlined_call_operand.vmem [shape: f32[16,128], index: 4, kind: output, shape index: {1}]
  %s5 = inlined_call_operand.vmem [shape: f32[16,128], index: 5, kind: output, shape index: {2}]
  %6 = xla_tuple %s3, %s4, %s5
  %s7 = sld [smem:[#allocation0]]
  $region61: #{qrnn_forward.4} parent=0
    _
  %s9 = ssub.s32 1, %s7
  %s10 = scalar_select 0, %s9, %s7
  loop: start=0, step=1, limit=4
  $region2: #{qrnn_forward.4} parent=0 // loop_pre_header
    _
  $region3: #{qrnn_forward.4} parent=0 // loop_header
    %s12 = sphi 0, %s16
    %p13 = scmp.ge.s32.totalorder %s12, 4
    %s22 = sphi 0, %s24
    %s25 = sphi 0, %s22
    %s26 = sphi 0, %s25
    %s42 = sphi 0, %s26
    %s46 = sphi 0, %s46
    %s48 = sphi 0, %s46
    %s49 = sphi 0, %s48
    %s63 = sphi 0, %s49
    %s67 = sphi 0, %s67
    %s69 = sphi 0, %s67
    %s70 = sphi 0, %s69
    %s84 = sphi 0, %s70
    %s90 = sphi 0, %s92
    %s93 = sphi 0, %s90
    %s94 = sphi 0, %s93
    %s110 = sphi 0, %s94
    %s116 = sphi 0, %s118
    %s119 = sphi 0, %s116
    %s120 = sphi 0, %s119
    %s136 = sphi 0, %s120
    %s142 = sphi 0, %s144
    %s145 = sphi 0, %s142
    %s146 = sphi 0, %s145
    %s162 = sphi 0, %s146
  $region4: #{qrnn_forward.4} parent=0 // loop_header_branch
    %15 = sbr.rel (%p13) target = $region8
  $region5: #{qrnn_forward.4} parent=0 // loop_body
    %s17 = ssub.s32 %s12, 1
    %s18 = ssub.s32 %s12, 2
    %s19 = sadd.s32 %s12, 1
    %s20 = ssub.s32 %s12, %s19
    %p21 = scmp.eq.s32.totalorder %s20, 0
    %s23 = sadd.s32 %s22, 1
    %s24 = scalar_select %p21, %s22, %s23
    %p27 = pneg %p21
    %p28 = scmp.eq.s32.totalorder %s12, 1
    %p29 = por %p27, %p28
    %p30 = scmp.ne.s32.totalorder %s22, %s25
    %p31 = scmp.eq.s32.totalorder %s12, 0
    %p32 = por %p30, %p31
    %p33 = scmp.ne.s32.totalorder %s22, %s25
    %p34 = scmp.eq.s32.totalorder %s17, 1
    %p35 = por %p33, %p34
    %p36 = scmp.ne.s32.totalorder %s25, %s26
    %p37 = scmp.eq.s32.totalorder %s17, 0
    %p38 = por %p36, %p37
    %p39 = scmp.ne.s32.totalorder %s25, %s26
    %p40 = scmp.eq.s32.totalorder %s18, 1
    %p41 = por %p39, %p40
    %p43 = scmp.ne.s32.totalorder %s26, %s42
    %p44 = scmp.eq.s32.totalorder %s18, 0
    %p45 = por %p43, %p44
    %s47 = sadd.s32 %s46, 1
    %p50 = scmp.eq.s32.totalorder %s12, 1
    %p51 = scmp.ne.s32.totalorder %s46, %s48
    %p52 = scmp.eq.s32.totalorder %s12, 0
    %p53 = por %p51, %p52
    %p54 = scmp.ne.s32.totalorder %s46, %s48
    %p55 = scmp.eq.s32.totalorder %s17, 1
    %p56 = por %p54, %p55
    %p57 = scmp.ne.s32.totalorder %s48, %s49
    %p58 = scmp.eq.s32.totalorder %s17, 0
    %p59 = por %p57, %p58
    %p60 = scmp.ne.s32.totalorder %s48, %s49
    %p61 = scmp.eq.s32.totalorder %s18, 1
    %p62 = por %p60, %p61
    %p64 = scmp.ne.s32.totalorder %s49, %s63
    %p65 = scmp.eq.s32.totalorder %s18, 0
    %p66 = por %p64, %p65
    %s68 = sadd.s32 %s67, 1
    %p71 = scmp.eq.s32.totalorder %s12, 1
    %p72 = scmp.ne.s32.totalorder %s67, %s69
    %p73 = scmp.eq.s32.totalorder %s12, 0
    %p74 = por %p72, %p73
    %p75 = scmp.ne.s32.totalorder %s67, %s69
    %p76 = scmp.eq.s32.totalorder %s17, 1
    %p77 = por %p75, %p76
    %p78 = scmp.ne.s32.totalorder %s69, %s70
    %p79 = scmp.eq.s32.totalorder %s17, 0
    %p80 = por %p78, %p79
    %p81 = scmp.ne.s32.totalorder %s69, %s70
    %p82 = scmp.eq.s32.totalorder %s18, 1
    %p83 = por %p81, %p82
    %p85 = scmp.ne.s32.totalorder %s70, %s84
    %p86 = scmp.eq.s32.totalorder %s18, 0
    %p87 = por %p85, %p86
    %s88 = ssub.s32 %s12, %s19
    %p89 = scmp.eq.s32.totalorder %s88, 0
    %s91 = sadd.s32 %s90, 1
    %s92 = scalar_select %p89, %s90, %s91
    %p95 = pneg %p89
    %p96 = scmp.eq.s32.totalorder %s12, 1
    %p97 = por %p95, %p96
    %p98 = scmp.ne.s32.totalorder %s90, %s93
    %p99 = scmp.eq.s32.totalorder %s12, 0
    %p100 = por %p98, %p99
    %p101 = scmp.ne.s32.totalorder %s90, %s93
    %p102 = scmp.eq.s32.totalorder %s17, 1
    %p103 = por %p101, %p102
    %p104 = scmp.ne.s32.totalorder %s93, %s94
    %p105 = scmp.eq.s32.totalorder %s17, 0
    %p106 = por %p104, %p105
    %p107 = scmp.ne.s32.totalorder %s93, %s94
    %p108 = scmp.eq.s32.totalorder %s18, 1
    %p109 = por %p107, %p108
    %p111 = scmp.ne.s32.totalorder %s94, %s110
    %p112 = scmp.eq.s32.totalorder %s18, 0
    %p113 = por %p111, %p112
    %s114 = ssub.s32 %s12, %s19
    %p115 = scmp.eq.s32.totalorder %s114, 0
    %s117 = sadd.s32 %s116, 1
    %s118 = scalar_select %p115, %s116, %s117
    %p121 = pneg %p115
    %p122 = scmp.eq.s32.totalorder %s12, 1
    %p123 = por %p121, %p122
    %p124 = scmp.ne.s32.totalorder %s116, %s119
    %p125 = scmp.eq.s32.totalorder %s12, 0
    %p126 = por %p124, %p125
    %p127 = scmp.ne.s32.totalorder %s116, %s119
    %p128 = scmp.eq.s32.totalorder %s17, 1
    %p129 = por %p127, %p128
    %p130 = scmp.ne.s32.totalorder %s119, %s120
    %p131 = scmp.eq.s32.totalorder %s17, 0
    %p132 = por %p130, %p131
    %p133 = scmp.ne.s32.totalorder %s119, %s120
    %p134 = scmp.eq.s32.totalorder %s18, 1
    %p135 = por %p133, %p134
    %p137 = scmp.ne.s32.totalorder %s120, %s136
    %p138 = scmp.eq.s32.totalorder %s18, 0
    %p139 = por %p137, %p138
    %s140 = ssub.s32 %s12, %s19
    %p141 = scmp.eq.s32.totalorder %s140, 0
    %s143 = sadd.s32 %s142, 1
    %s144 = scalar_select %p141, %s142, %s143
    %p147 = pneg %p141
    %p148 = scmp.eq.s32.totalorder %s12, 1
    %p149 = por %p147, %p148
    %p150 = scmp.ne.s32.totalorder %s142, %s145
    %p151 = scmp.eq.s32.totalorder %s12, 0
    %p152 = por %p150, %p151
    %p153 = scmp.ne.s32.totalorder %s142, %s145
    %p154 = scmp.eq.s32.totalorder %s17, 1
    %p155 = por %p153, %p154
    %p156 = scmp.ne.s32.totalorder %s145, %s146
    %p157 = scmp.eq.s32.totalorder %s17, 0
    %p158 = por %p156, %p157
    %p159 = scmp.ne.s32.totalorder %s145, %s146
    %p160 = scmp.eq.s32.totalorder %s18, 1
    %p161 = por %p159, %p160
    %p163 = scmp.ne.s32.totalorder %s146, %s162
    %p164 = scmp.eq.s32.totalorder %s18, 0
    %p165 = por %p163, %p164
    %p166 = scmp.le.s32.totalorder 1, %s12
    %p167 = scmp.lt.s32.totalorder %s12, 3
    %p168 = pnand %p166, %p167
    %p169 = pneg %p168
    // Predicated region
    $region9: #{qrnn_forward.4} parent=5 // pred_check
      _
    $region10: #{qrnn_forward.4} parent=5 // pred_check_branch
      %171 = sbr.rel (%p168) target = $region12
    $region11: #{qrnn_forward.4} parent=5 // pred_region
      %s172 = ssub.s32 %s12, 1
      // Predicated region
      $region13: #{qrnn_forward.4} parent=11 // pred_check
        %p173 = pneg %p59
      $region14: #{qrnn_forward.4} parent=11 // pred_check_branch
        %175 = sbr.rel (%p173) target = $region16
      $region15: #{qrnn_forward.4} parent=11 // pred_region
        _
      $region16: #{qrnn_forward.4} parent=11 // pred_fallthru
        _
      // Predicated region
      $region17: #{qrnn_forward.4} parent=11 // pred_check
        %p176 = pneg %p80
      $region18: #{qrnn_forward.4} parent=11 // pred_check_branch
        %178 = sbr.rel (%p176) target = $region20
      $region19: #{qrnn_forward.4} parent=11 // pred_region
        _
      $region20: #{qrnn_forward.4} parent=11 // pred_fallthru
        _
    $region12: #{qrnn_forward.4} parent=5 // pred_fallthru
      _
    %p179 = scmp.lt.s32.totalorder %s12, 2
    // Predicated region
    $region21: #{qrnn_forward.4} parent=5 // pred_check
      %p180 = pneg %p179
    $region22: #{qrnn_forward.4} parent=5 // pred_check_branch
      %182 = sbr.rel (%p180) target = $region24
    $region23: #{qrnn_forward.4} parent=5 // pred_region
      // Predicated region
      $region25: #{qrnn_forward.4} parent=23 // pred_check
        %p183 = pneg %p32
      $region26: #{qrnn_forward.4} parent=23 // pred_check_branch
        %185 = sbr.rel (%p183) target = $region28
      $region27: #{qrnn_forward.4} parent=23 // pred_region
        %p186 = scmp.lt.s32.totalorder %s12, 1
        %s187 = scalar_select %p186, %s12, 1
        %s188 = smul.addr %s187, 8
        %s189 = scalar_lea.vmem %s0, %s188
      $region28: #{qrnn_forward.4} parent=23 // pred_fallthru
        _
    $region24: #{qrnn_forward.4} parent=5 // pred_fallthru
      _
    %p190 = scmp.le.s32.totalorder 1, %s12
    %p191 = scmp.lt.s32.totalorder %s12, 3
    %p192 = pnand %p190, %p191
    %p193 = pneg %p192
    // Predicated region
    $region29: #{qrnn_forward.4} parent=5 // pred_check
      _
    $region30: #{qrnn_forward.4} parent=5 // pred_check_branch
      %195 = sbr.rel (%p192) target = $region32
    $region31: #{qrnn_forward.4} parent=5 // pred_region
      %s196 = ssub.s32 %s12, 1
      %p197 = scmp.lt.s32.totalorder %s17, 1
      %s198 = scalar_select %p197, %s17, 1
      %s199 = smul.addr %s198, 8
      %s200 = scalar_lea.vmem %s0, %s199
      %p201 = pneg %p38
      %p202 = pneg %p35
      %p203 = pneg %p59
      %p204 = pneg %p56
      %p205 = pneg %p80
      %p206 = pneg %p77
      %p207 = pneg %p106
      %p208 = pneg %p103
      %p209 = scmp.lt.s32.totalorder %s17, 1
      %s210 = scalar_select %p209, %s17, 1
      %s211 = smul.addr %s210, 8
      %s212 = scalar_lea.vmem %s3, %s211
      %p213 = pneg %p132
      %p214 = pneg %p129
      %p215 = scmp.lt.s32.totalorder %s17, 1
      %s216 = scalar_select %p215, %s17, 1
      %s217 = smul.addr %s216, 8
      %s218 = scalar_lea.vmem %s4, %s217
      %p219 = pneg %p158
      %p220 = pneg %p155
      %p221 = scmp.lt.s32.totalorder %s17, 1
      %s222 = scalar_select %p221, %s17, 1
      %s223 = smul.addr %s222, 8
      %s224 = scalar_lea.vmem %s5, %s223
      %p225 = scmp.lt.s32.totalorder %s17, 1
      %s226 = scalar_select %p225, %s17, 1
      %s227 = smul.addr %s226, 8
      %s228 = scalar_lea.vmem %s0, %s227
      %p229 = scmp.lt.s32.totalorder %s17, 1
      %s230 = scalar_select %p229, %s17, 1
      %s231 = smul.addr %s230, 8
      %s232 = scalar_lea.vmem %s3, %s231
      %p233 = scmp.lt.s32.totalorder %s17, 1
      %s234 = scalar_select %p233, %s17, 1
      %s235 = smul.addr %s234, 8
      %s236 = scalar_lea.vmem %s4, %s235
      %p237 = scmp.lt.s32.totalorder %s17, 1
      %s238 = scalar_select %p237, %s17, 1
      %s239 = smul.addr %s238, 8
      %s240 = scalar_lea.vmem %s5, %s239
      %v241 = vld [vmem:[%s228] sm:$0xff]
      %v242 = vld [vmem:[%s1] sm:$0xff]
      %v243 = vld [vmem:[%s1 + $0x8] sm:$0xff]
      %v244 = vld [vmem:[%s1 + $0x10] sm:$0xff]
      %v245 = vld [vmem:[%s1 + $0x18] sm:$0xff]
      %v246 = vld [vmem:[%s1 + $0x20] sm:$0xff]
      %v247 = vld [vmem:[%s1 + $0x28] sm:$0xff]
      %v248 = vld [vmem:[%s2] sm:$0x7]
      %v250 = vlaneseq
      %v251 = vshrl.u32 %v250, 7
      %v252 = vsub.s32 0, %v251
      %v253 = vrot.slane %v248, %v252
      %v254 = vlaneseq
      %v255 = vshrl.u32 %v254, 7
      %v256 = vsub.s32 1, %v255
      %v257 = vrot.slane %v248, %v256
      %v258 = vlaneseq
      %v259 = vshrl.u32 %v258, 7
      %v260 = vsub.s32 2, %v259
      %v261 = vrot.slane %v248, %v260
      %vm265 = vcmask 130048
      %v267 = vsel %vm265, %v241, 0
      %269 = vmatprep.subr.mxu0 0.0
      %270 = vmatpush1.msra.mxu0 0.0
      %271 = vmatprep.subr.mxu0 0.0
      %272 = vmatpush1.msra.mxu0 0.0
      %273 = vmatprep.subr.mxu0 0.0
      %274 = vmatpush1.msra.mxu0 0.0
      %275 = vmatprep.subr.mxu0 0.0
      %276 = vmatpush1.msra.mxu0 0.0
      %277 = vmatprep.subr.mxu0 0.0
      %278 = vmatpush1.msra.mxu0 0.0
      %279 = vmatprep.subr.mxu0 0.0
      %280 = vmatpush1.msra.mxu0 0.0
      %281 = vmatprep.subr.mxu0 0.0
      %282 = vmatpush1.msra.mxu0 0.0
      %283 = vmatprep.subr.mxu0 0.0
      %284 = vmatpush1.msra.mxu0 0.0
      %285 = vmatprep.subr.mxu0 0.0
      %286 = vmatpush1.msra.mxu0 0.0
      %287 = vmatprep.subr.mxu0 0.0
      %288 = vmatpush1.msra.mxu0 0.0
      %289 = vmatprep.subr.mxu0 0.0
      %290 = vmatpush1.msra.mxu0 0.0
      %291 = vmatprep.subr.mxu0 0.0
      %292 = vmatpush1.msra.mxu0 0.0
      %293 = vmatprep.subr.mxu0 0.0
      %294 = vmatpush1.msra.mxu0 0.0
      %295 = vmatprep.subr.mxu0 0.0
      %296 = vmatpush1.msra.mxu0 0.0
      %297 = vmatprep.subr.mxu0 %v246
      %298 = vmatpush1.msra.mxu0 %v245
      %299 = vmatprep.subr.mxu0 %v243
      %300 = vmatpush1.msra.mxu0 %v242
      %301 = vmatprep.subr.mxu0 0.0
      %302 = vmatpush2.msra.mxu0 0.0
      %303 = vmatprep.subr.mxu0 0.0
      %304 = vmatpush2.msra.mxu0 0.0
      %305 = vmatprep.subr.mxu0 0.0
      %306 = vmatpush2.msra.mxu0 0.0
      %307 = vmatprep.subr.mxu0 0.0
      %308 = vmatpush2.msra.mxu0 0.0
      %309 = vmatprep.subr.mxu0 0.0
      %310 = vmatpush2.msra.mxu0 0.0
      %311 = vmatprep.subr.mxu0 0.0
      %312 = vmatpush2.msra.mxu0 0.0
      %313 = vmatprep.subr.mxu0 0.0
      %314 = vmatpush2.msra.mxu0 0.0
      %315 = vmatprep.subr.mxu0 0.0
      %316 = vmatpush2.msra.mxu0 0.0
      %317 = vmatprep.subr.mxu0 0.0
      %318 = vmatpush2.msra.mxu0 0.0
      %319 = vmatprep.subr.mxu0 0.0
      %320 = vmatpush2.msra.mxu0 0.0
      %321 = vmatprep.subr.mxu0 0.0
      %322 = vmatpush2.msra.mxu0 0.0
      %323 = vmatprep.subr.mxu0 0.0
      %324 = vmatpush2.msra.mxu0 0.0
      %325 = vmatprep.subr.mxu0 0.0
      %326 = vmatpush2.msra.mxu0 0.0
      %327 = vmatprep.subr.mxu0 0.0
      %328 = vmatpush2.msra.mxu0 0.0
      %329 = vmatprep.subr.mxu0 0.0
      %330 = vmatpush2.msra.mxu0 0.0
      %331 = vmatprep.subr.mxu0 0.0
      %332 = vmatpush2.msra.mxu0 0.0
      %333 = vmatprep.mubr.f32.mxu0 0.0
      %334 = vmatmul.mubr.f32.gmra.mxu0 %v267
      %v335 = vpop.f32.mrf.mxu0
      %v336 = vadd.f32 %v253, %v335
      %v337 = vpop.f32.mrf.mxu0
      %v338 = vadd.f32 %v257, %v337
      %339 = vdwg.mxu0
      %340 = vmatprep.subr.mxu0 0.0
      %341 = vmatpush1.msra.mxu0 0.0
      %342 = vmatprep.subr.mxu0 0.0
      %343 = vmatpush1.msra.mxu0 0.0
      %344 = vmatprep.subr.mxu0 0.0
      %345 = vmatpush1.msra.mxu0 0.0
      %346 = vmatprep.subr.mxu0 0.0
      %347 = vmatpush1.msra.mxu0 0.0
      %348 = vmatprep.subr.mxu0 0.0
      %349 = vmatpush1.msra.mxu0 0.0
      %350 = vmatprep.subr.mxu0 0.0
      %351 = vmatpush1.msra.mxu0 0.0
      %352 = vmatprep.subr.mxu0 0.0
      %353 = vmatpush1.msra.mxu0 0.0
      %354 = vmatprep.subr.mxu0 0.0
      %355 = vmatpush1.msra.mxu0 0.0
      %356 = vmatprep.subr.mxu0 0.0
      %357 = vmatpush1.msra.mxu0 0.0
      %358 = vmatprep.subr.mxu0 0.0
      %359 = vmatpush1.msra.mxu0 0.0
      %360 = vmatprep.subr.mxu0 0.0
      %361 = vmatpush1.msra.mxu0 0.0
      %362 = vmatprep.subr.mxu0 0.0
      %363 = vmatpush1.msra.mxu0 0.0
      %364 = vmatprep.subr.mxu0 0.0
      %365 = vmatpush1.msra.mxu0 0.0
      %366 = vmatprep.subr.mxu0 0.0
      %367 = vmatpush1.msra.mxu0 0.0
      %368 = vmatprep.subr.mxu0 0.0
      %369 = vmatpush1.msra.mxu0 %v247
      %370 = vmatprep.subr.mxu0 0.0
      %371 = vmatpush1.msra.mxu0 %v244
      %372 = vmatprep.subr.mxu0 0.0
      %373 = vmatpush2.msra.mxu0 0.0
      %374 = vmatprep.subr.mxu0 0.0
      %375 = vmatpush2.msra.mxu0 0.0
      %376 = vmatprep.subr.mxu0 0.0
      %377 = vmatpush2.msra.mxu0 0.0
      %378 = vmatprep.subr.mxu0 0.0
      %379 = vmatpush2.msra.mxu0 0.0
      %380 = vmatprep.subr.mxu0 0.0
      %381 = vmatpush2.msra.mxu0 0.0
      %382 = vmatprep.subr.mxu0 0.0
      %383 = vmatpush2.msra.mxu0 0.0
      %384 = vmatprep.subr.mxu0 0.0
      %385 = vmatpush2.msra.mxu0 0.0
      %386 = vmatprep.subr.mxu0 0.0
      %387 = vmatpush2.msra.mxu0 0.0
      %388 = vmatprep.subr.mxu0 0.0
      %389 = vmatpush2.msra.mxu0 0.0
      %390 = vmatprep.subr.mxu0 0.0
      %391 = vmatpush2.msra.mxu0 0.0
      %392 = vmatprep.subr.mxu0 0.0
      %393 = vmatpush2.msra.mxu0 0.0
      %394 = vmatprep.subr.mxu0 0.0
      %395 = vmatpush2.msra.mxu0 0.0
      %396 = vmatprep.subr.mxu0 0.0
      %397 = vmatpush2.msra.mxu0 0.0
      %398 = vmatprep.subr.mxu0 0.0
      %399 = vmatpush2.msra.mxu0 0.0
      %400 = vmatprep.subr.mxu0 0.0
      %401 = vmatpush2.msra.mxu0 0.0
      %402 = vmatprep.subr.mxu0 0.0
      %403 = vmatpush2.msra.mxu0 0.0
      %404 = vmatprep.mubr.f32.mxu0 0.0
      %405 = vmatmul.mubr.f32.gmra.mxu0 %v267
      %v406 = vpop.f32.mrf.mxu0
      %v407 = vadd.f32 %v261, %v406
      %v408 = vpop.f32.mrf.mxu0
      %409 = vdwg.mxu0
      %v410 = vtanh.pop %v336
      %411 = vst [vmem:[%s232] sm:$0xff] %v410
      %v412 = vxor.u32 %v338, 2147483648
      %v413 = vmul.f32 %v412, 1.442695
      %v414 = vpow.pop %v413
      %v415 = vadd.f32 %v414, 1.0
      %v416 = vrcp.pop %v415
      %v417 = vmul.f32 1.0, %v416
      %418 = vst [vmem:[%s236] sm:$0xff] %v417
      %v419 = vxor.u32 %v407, 2147483648
      %v420 = vmul.f32 %v419, 1.442695
      %v421 = vpow.pop %v420
      %v422 = vadd.f32 %v421, 1.0
      %v423 = vrcp.pop %v422
      %v424 = vmul.f32 1.0, %v423
      %425 = vst [vmem:[%s240] sm:$0xff] %v424
      %p426 = scmp.lt.s32.totalorder %s17, 1
      %s427 = scalar_select %p426, %s17, 1
      %s428 = smul.addr %s427, 8
      %s429 = scalar_lea.vmem %s3, %s428
      %p430 = scmp.lt.s32.totalorder %s17, 1
      %s431 = scalar_select %p430, %s17, 1
      %s432 = smul.addr %s431, 8
      %s433 = scalar_lea.vmem %s4, %s432
      %p434 = scmp.lt.s32.totalorder %s17, 1
      %s435 = scalar_select %p434, %s17, 1
      %s436 = smul.addr %s435, 8
      %s437 = scalar_lea.vmem %s5, %s436
      // Predicated region
      $region33: #{qrnn_forward.4} parent=31 // pred_check
        %p438 = pneg %p103
      $region34: #{qrnn_forward.4} parent=31 // pred_check_branch
        %440 = sbr.rel (%p438) target = $region36
      $region35: #{qrnn_forward.4} parent=31 // pred_region
        _
      $region36: #{qrnn_forward.4} parent=31 // pred_fallthru
        _
      // Predicated region
      $region37: #{qrnn_forward.4} parent=31 // pred_check
        %p441 = pneg %p129
      $region38: #{qrnn_forward.4} parent=31 // pred_check_branch
        %443 = sbr.rel (%p441) target = $region40
      $region39: #{qrnn_forward.4} parent=31 // pred_region
        _
      $region40: #{qrnn_forward.4} parent=31 // pred_fallthru
        _
      // Predicated region
      $region41: #{qrnn_forward.4} parent=31 // pred_check
        %p444 = pneg %p155
      $region42: #{qrnn_forward.4} parent=31 // pred_check_branch
        %446 = sbr.rel (%p444) target = $region44
      $region43: #{qrnn_forward.4} parent=31 // pred_region
        _
      $region44: #{qrnn_forward.4} parent=31 // pred_fallthru
        _
    $region32: #{qrnn_forward.4} parent=5 // pred_fallthru
      _
    %p447 = scmp.le.s32.totalorder 2, %s12
    // Predicated region
    $region45: #{qrnn_forward.4} parent=5 // pred_check
      %p448 = pneg %p447
    $region46: #{qrnn_forward.4} parent=5 // pred_check_branch
      %450 = sbr.rel (%p448) target = $region48
    $region47: #{qrnn_forward.4} parent=5 // pred_region
      %s451 = ssub.s32 %s12, 2
      // Predicated region
      $region49: #{qrnn_forward.4} parent=47 // pred_check
        %p452 = pneg %p109
      $region50: #{qrnn_forward.4} parent=47 // pred_check_branch
        %454 = sbr.rel (%p452) target = $region52
      $region51: #{qrnn_forward.4} parent=47 // pred_region
        %p455 = scmp.lt.s32.totalorder %s18, 1
        %s456 = scalar_select %p455, %s18, 1
        %s457 = smul.addr %s456, 8
        %s458 = scalar_lea.vmem %s3, %s457
      $region52: #{qrnn_forward.4} parent=47 // pred_fallthru
        _
      // Predicated region
      $region53: #{qrnn_forward.4} parent=47 // pred_check
        %p459 = pneg %p135
      $region54: #{qrnn_forward.4} parent=47 // pred_check_branch
        %461 = sbr.rel (%p459) target = $region56
      $region55: #{qrnn_forward.4} parent=47 // pred_region
        %p462 = scmp.lt.s32.totalorder %s18, 1
        %s463 = scalar_select %p462, %s18, 1
        %s464 = smul.addr %s463, 8
        %s465 = scalar_lea.vmem %s4, %s464
      $region56: #{qrnn_forward.4} parent=47 // pred_fallthru
        _
      // Predicated region
      $region57: #{qrnn_forward.4} parent=47 // pred_check
        %p466 = pneg %p161
      $region58: #{qrnn_forward.4} parent=47 // pred_check_branch
        %468 = sbr.rel (%p466) target = $region60
      $region59: #{qrnn_forward.4} parent=47 // pred_region
        %p469 = scmp.lt.s32.totalorder %s18, 1
        %s470 = scalar_select %p469, %s18, 1
        %s471 = smul.addr %s470, 8
        %s472 = scalar_lea.vmem %s5, %s471
      $region60: #{qrnn_forward.4} parent=47 // pred_fallthru
        _
    $region48: #{qrnn_forward.4} parent=5 // pred_fallthru
      _
  $region6: #{qrnn_forward.4} parent=0 // loop_footer
    %s16 = sadd.s32 1, %s12
  $region7: #{qrnn_forward.4} parent=0 // loop_footer_branch
    %11 = sbr.rel target = $region3
  $region8: #{qrnn_forward.4} parent=0 // loop_exit
    _

// kernel: qrnn_forward.5
$region0: #{qrnn_forward.5}
  #allocation0 [shape = 'u32[]', space=smem, size = 0x4, offset = 0x4, fixed_abs, tag = 'smem constant byte address 0x4 - core index']
  #allocation1 [shape = 'u32[144,128]{1,0:T(1,128)}', space=vmem, size = 0x12000, scoped, tag = 'internal scratch']
  #allocation2 [shape = 'f32[2,128]{1,0:T(2,128)}', space=vmem, size = 0x400, scoped, tag = 'scratch operand']
  %s0 = inlined_call_operand.vmem [shape: f32[8,2,128], index: 0, kind: input, shape index: {}]
  %s1 = inlined_call_operand.vmem [shape: f32[8,2,128], index: 1, kind: input, shape index: {}]
  %s2 = inlined_call_operand.vmem [shape: f32[8,2,128], index: 2, kind: input, shape index: {}]
  %s3 = inlined_call_operand.vmem [shape: f32[1,2,128], index: 3, kind: input, shape index: {}]
  %s4 = inlined_call_operand.vmem [shape: f32[8,2,128], index: 4, kind: output, shape index: {0}]
  %s5 = inlined_call_operand.vmem [shape: f32[1,2,128], index: 5, kind: output, shape index: {1}]
  %6 = xla_tuple %s4, %s5
  %s7 = sld [smem:[#allocation0]]
  $region42: #{qrnn_forward.5} parent=0
    _
  %s9 = ssub.s32 1, %s7
  %s10 = scalar_select 0, %s9, %s7
  // Predicated region
  $region2: #{qrnn_forward.5} parent=0 // pred_check
    _
  $region3: #{qrnn_forward.5} parent=0 // pred_check_branch
    %12 = sbr.rel (0) target = $region5
  $region4: #{qrnn_forward.5} parent=0 // pred_region
    _
  $region5: #{qrnn_forward.5} parent=0 // pred_fallthru
    _
  // Predicated region
  $region6: #{qrnn_forward.5} parent=0 // pred_check
    _
  $region7: #{qrnn_forward.5} parent=0 // pred_check_branch
    %14 = sbr.rel (0) target = $region9
  $region8: #{qrnn_forward.5} parent=0 // pred_region
    _
  $region9: #{qrnn_forward.5} parent=0 // pred_fallthru
    _
  // Predicated region
  $region10: #{qrnn_forward.5} parent=0 // pred_check
    _
  $region11: #{qrnn_forward.5} parent=0 // pred_check_branch
    %16 = sbr.rel (0) target = $region13
  $region12: #{qrnn_forward.5} parent=0 // pred_region
    _
  $region13: #{qrnn_forward.5} parent=0 // pred_fallthru
    _
  // Predicated region
  $region14: #{qrnn_forward.5} parent=0 // pred_check
    _
  $region15: #{qrnn_forward.5} parent=0 // pred_check_branch
    %18 = sbr.rel (0) target = $region17
  $region16: #{qrnn_forward.5} parent=0 // pred_region
    _
  $region17: #{qrnn_forward.5} parent=0 // pred_fallthru
    _
  %p19 = scmp.eq.s32.totalorder 0, 0
  // Predicated region
  $region18: #{qrnn_forward.5} parent=0 // pred_check
    %p20 = pneg %p19
  $region19: #{qrnn_forward.5} parent=0 // pred_check_branch
    %22 = sbr.rel (%p20) target = $region21
  $region20: #{qrnn_forward.5} parent=0 // pred_region
    %v23 = vld [vmem:[%s3] sm:$0x3]
    %24 = vst [vmem:[#allocation2] sm:$0x3] %v23
  $region21: #{qrnn_forward.5} parent=0 // pred_fallthru
    _
  %v25 = vld [vmem:[#allocation2] sm:$0x3]
  %v26 = vld [vmem:[%s0] sm:$0x3]
  %v27 = vld [vmem:[%s1] sm:$0x3]
  %v28 = vld [vmem:[%s2] sm:$0x3]
  %v29 = vmul.f32 %v27, %v26
  %v30 = vsub.f32 1.0, %v27
  %v31 = vmul.f32 %v30, %v25
  %v32 = vadd.f32 %v29, %v31
  %v33 = vmul.f32 %v28, %v32
  %34 = vst [vmem:[%s4] sm:$0x3] %v33
  %s35 = scalar_lea.vmem %s0, 2
  %v36 = vld [vmem:[%s35] sm:$0x3]
  %s37 = scalar_lea.vmem %s1, 2
  %v38 = vld [vmem:[%s37] sm:$0x3]
  %s39 = scalar_lea.vmem %s2, 2
  %v40 = vld [vmem:[%s39] sm:$0x3]
  %v41 = vmul.f32 %v38, %v36
  %v42 = vsub.f32 1.0, %v38
  %v43 = vmul.f32 %v42, %v32
  %v44 = vadd.f32 %v41, %v43
  %v45 = vmul.f32 %v40, %v44
  %s46 = scalar_lea.vmem %s4, 2
  %47 = vst [vmem:[%s46] sm:$0x3] %v45
  %s48 = scalar_lea.vmem %s0, 4
  %v49 = vld [vmem:[%s48] sm:$0x3]
  %s50 = scalar_lea.vmem %s1, 4
  %v51 = vld [vmem:[%s50] sm:$0x3]
  %s52 = scalar_lea.vmem %s2, 4
  %v53 = vld [vmem:[%s52] sm:$0x3]
  %v54 = vmul.f32 %v51, %v49
  %v55 = vsub.f32 1.0, %v51
  %v56 = vmul.f32 %v55, %v44
  %v57 = vadd.f32 %v54, %v56
  %v58 = vmul.f32 %v53, %v57
  %s59 = scalar_lea.vmem %s4, 4
  %60 = vst [vmem:[%s59] sm:$0x3] %v58
  %s61 = scalar_lea.vmem %s0, 6
  %v62 = vld [vmem:[%s61] sm:$0x3]
  %s63 = scalar_lea.vmem %s1, 6
  %v64 = vld [vmem:[%s63] sm:$0x3]
  %s65 = scalar_lea.vmem %s2, 6
  %v66 = vld [vmem:[%s65] sm:$0x3]
  %v67 = vmul.f32 %v64, %v62
  %v68 = vsub.f32 1.0, %v64
  %v69 = vmul.f32 %v68, %v57
  %v70 = vadd.f32 %v67, %v69
  %v71 = vmul.f32 %v66, %v70
  %s72 = scalar_lea.vmem %s4, 6
  %73 = vst [vmem:[%s72] sm:$0x3] %v71
  %s74 = scalar_lea.vmem %s0, 8
  %v75 = vld [vmem:[%s74] sm:$0x3]
  %s76 = scalar_lea.vmem %s1, 8
  %v77 = vld [vmem:[%s76] sm:$0x3]
  %s78 = scalar_lea.vmem %s2, 8
  %v79 = vld [vmem:[%s78] sm:$0x3]
  %v80 = vmul.f32 %v77, %v75
  %v81 = vsub.f32 1.0, %v77
  %v82 = vmul.f32 %v81, %v70
  %v83 = vadd.f32 %v80, %v82
  %v84 = vmul.f32 %v79, %v83
  %s85 = scalar_lea.vmem %s4, 8
  %86 = vst [vmem:[%s85] sm:$0x3] %v84
  %s87 = scalar_lea.vmem %s0, 10
  %v88 = vld [vmem:[%s87] sm:$0x3]
  %s89 = scalar_lea.vmem %s1, 10
  %v90 = vld [vmem:[%s89] sm:$0x3]
  %s91 = scalar_lea.vmem %s2, 10
  %v92 = vld [vmem:[%s91] sm:$0x3]
  %v93 = vmul.f32 %v90, %v88
  %v94 = vsub.f32 1.0, %v90
  %v95 = vmul.f32 %v94, %v83
  %v96 = vadd.f32 %v93, %v95
  %v97 = vmul.f32 %v92, %v96
  %s98 = scalar_lea.vmem %s4, 10
  %99 = vst [vmem:[%s98] sm:$0x3] %v97
  %s100 = scalar_lea.vmem %s0, 12
  %v101 = vld [vmem:[%s100] sm:$0x3]
  %s102 = scalar_lea.vmem %s1, 12
  %v103 = vld [vmem:[%s102] sm:$0x3]
  %s104 = scalar_lea.vmem %s2, 12
  %v105 = vld [vmem:[%s104] sm:$0x3]
  %v106 = vmul.f32 %v103, %v101
  %v107 = vsub.f32 1.0, %v103
  %v108 = vmul.f32 %v107, %v96
  %v109 = vadd.f32 %v106, %v108
  %v110 = vmul.f32 %v105, %v109
  %s111 = scalar_lea.vmem %s4, 12
  %112 = vst [vmem:[%s111] sm:$0x3] %v110
  %s113 = scalar_lea.vmem %s0, 14
  %v114 = vld [vmem:[%s113] sm:$0x3]
  %s115 = scalar_lea.vmem %s1, 14
  %v116 = vld [vmem:[%s115] sm:$0x3]
  %s117 = scalar_lea.vmem %s2, 14
  %v118 = vld [vmem:[%s117] sm:$0x3]
  %v119 = vmul.f32 %v116, %v114
  %v120 = vsub.f32 1.0, %v116
  %v121 = vmul.f32 %v120, %v109
  %v122 = vadd.f32 %v119, %v121
  %v123 = vmul.f32 %v118, %v122
  %s124 = scalar_lea.vmem %s4, 14
  %125 = vst [vmem:[%s124] sm:$0x3] %v123
  %126 = vst [vmem:[#allocation2] sm:$0x3] %v122
  // Predicated region
  $region22: #{qrnn_forward.5} parent=0 // pred_check
    %p127 = pneg %p19
  $region23: #{qrnn_forward.5} parent=0 // pred_check_branch
    %129 = sbr.rel (%p127) target = $region25
  $region24: #{qrnn_forward.5} parent=0 // pred_region
    %130 = vst [vmem:[%s5] sm:$0x3] %v122
  $region25: #{qrnn_forward.5} parent=0 // pred_fallthru
    _
  // Predicated region
  $region26: #{qrnn_forward.5} parent=0 // pred_check
    _
  $region27: #{qrnn_forward.5} parent=0 // pred_check_branch
    %132 = sbr.rel (0) target = $region29
  $region28: #{qrnn_forward.5} parent=0 // pred_region
    _
  $region29: #{qrnn_forward.5} parent=0 // pred_fallthru
    _
  // Predicated region
  $region30: #{qrnn_forward.5} parent=0 // pred_check
    _
  $region31: #{qrnn_forward.5} parent=0 // pred_check_branch
    %134 = sbr.rel (0) target = $region33
  $region32: #{qrnn_forward.5} parent=0 // pred_region
    _
  $region33: #{qrnn_forward.5} parent=0 // pred_fallthru
    _
  // Predicated region
  $region34: #{qrnn_forward.5} parent=0 // pred_check
    _
  $region35: #{qrnn_forward.5} parent=0 // pred_check_branch
    %136 = sbr.rel (0) target = $region37
  $region36: #{qrnn_forward.5} parent=0 // pred_region
    _
  $region37: #{qrnn_forward.5} parent=0 // pred_fallthru
    _
  // Predicated region
  $region38: #{qrnn_forward.5} parent=0 // pred_check
    _
  $region39: #{qrnn_forward.5} parent=0 // pred_check_branch
    %138 = sbr.rel (0) target = $region41
  $region40: #{qrnn_forward.5} parent=0 // pred_region
    _
  $region41: #{qrnn_forward.5} parent=0 // pred_fallthru
    _

// kernel: qrnn_forward.6
$region0: #{qrnn_forward.6}
  #allocation0 [shape = 'u32[]', space=smem, size = 0x4, offset = 0x4, fixed_abs, tag = 'smem constant byte address 0x4 - core index']
  #allocation1 [shape = 'u32[144,128]{1,0:T(1,128)}', space=vmem, size = 0x12000, scoped, tag = 'internal scratch']
  %s0 = inlined_call_operand.vmem [shape: f32[16,32], index: 0, kind: input, shape index: {}]
  %s1 = inlined_call_operand.vmem [shape: f32[32,384], index: 1, kind: input, shape index: {}]
  %s2 = inlined_call_operand.vmem [shape: f32[1,384], index: 2, kind: input, shape index: {}]
  %s3 = inlined_call_operand.vmem [shape: f32[16,128], index: 3, kind: output, shape index: {0}]
  %s4 = inlined_call_operand.vmem [shape: f32[16,128], index: 4, kind: output, shape index: {1}]
  %s5 = inlined_call_operand.vmem [shape: f32[16,128], index: 5, kind: output, shape index: {2}]
  %6 = xla_tuple %s3, %s4, %s5
  %s7 = sld [smem:[#allocation0]]
  $region61: #{qrnn_forward.6} parent=0
    _
  %s9 = ssub.s32 1, %s7
  %s10 = scalar_select 0, %s9, %s7
  loop: start=0, step=1, limit=4
  $region2: #{qrnn_forward.6} parent=0 // loop_pre_header
    _
  $region3: #{qrnn_forward.6} parent=0 // loop_header
    %s12 = sphi 0, %s16
    %p13 = scmp.ge.s32.totalorder %s12, 4
    %s22 = sphi 0, %s24
    %s25 = sphi 0, %s22
    %s26 = sphi 0, %s25
    %s42 = sphi 0, %s26
    %s46 = sphi 0, %s46
    %s48 = sphi 0, %s46
    %s49 = sphi 0, %s48
    %s63 = sphi 0, %s49
    %s67 = sphi 0, %s67
    %s69 = sphi 0, %s67
    %s70 = sphi 0, %s69
    %s84 = sphi 0, %s70
    %s90 = sphi 0, %s92
    %s93 = sphi 0, %s90
    %s94 = sphi 0, %s93
    %s110 = sphi 0, %s94
    %s116 = sphi 0, %s118
    %s119 = sphi 0, %s116
    %s120 = sphi 0, %s119
    %s136 = sphi 0, %s120
    %s142 = sphi 0, %s144
    %s145 = sphi 0, %s142
    %s146 = sphi 0, %s145
    %s162 = sphi 0, %s146
  $region4: #{qrnn_forward.6} parent=0 // loop_header_branch
    %15 = sbr.rel (%p13) target = $region8
  $region5: #{qrnn_forward.6} parent=0 // loop_body
    %s17 = ssub.s32 %s12, 1
    %s18 = ssub.s32 %s12, 2
    %s19 = sadd.s32 %s12, 1
    %s20 = ssub.s32 %s12, %s19
    %p21 = scmp.eq.s32.totalorder %s20, 0
    %s23 = sadd.s32 %s22, 1
    %s24 = scalar_select %p21, %s22, %s23
    %p27 = pneg %p21
    %p28 = scmp.eq.s32.totalorder %s12, 1
    %p29 = por %p27, %p28
    %p30 = scmp.ne.s32.totalorder %s22, %s25
    %p31 = scmp.eq.s32.totalorder %s12, 0
    %p32 = por %p30, %p31
    %p33 = scmp.ne.s32.totalorder %s22, %s25
    %p34 = scmp.eq.s32.totalorder %s17, 1
    %p35 = por %p33, %p34
    %p36 = scmp.ne.s32.totalorder %s25, %s26
    %p37 = scmp.eq.s32.totalorder %s17, 0
    %p38 = por %p36, %p37
    %p39 = scmp.ne.s32.totalorder %s25, %s26
    %p40 = scmp.eq.s32.totalorder %s18, 1
    %p41 = por %p39, %p40
    %p43 = scmp.ne.s32.totalorder %s26, %s42
    %p44 = scmp.eq.s32.totalorder %s18, 0
    %p45 = por %p43, %p44
    %s47 = sadd.s32 %s46, 1
    %p50 = scmp.eq.s32.totalorder %s12, 1
    %p51 = scmp.ne.s32.totalorder %s46, %s48
    %p52 = scmp.eq.s32.totalorder %s12, 0
    %p53 = por %p51, %p52
    %p54 = scmp.ne.s32.totalorder %s46, %s48
    %p55 = scmp.eq.s32.totalorder %s17, 1
    %p56 = por %p54, %p55
    %p57 = scmp.ne.s32.totalorder %s48, %s49
    %p58 = scmp.eq.s32.totalorder %s17, 0
    %p59 = por %p57, %p58
    %p60 = scmp.ne.s32.totalorder %s48, %s49
    %p61 = scmp.eq.s32.totalorder %s18, 1
    %p62 = por %p60, %p61
    %p64 = scmp.ne.s32.totalorder %s49, %s63
    %p65 = scmp.eq.s32.totalorder %s18, 0
    %p66 = por %p64, %p65
    %s68 = sadd.s32 %s67, 1
    %p71 = scmp.eq.s32.totalorder %s12, 1
    %p72 = scmp.ne.s32.totalorder %s67, %s69
    %p73 = scmp.eq.s32.totalorder %s12, 0
    %p74 = por %p72, %p73
    %p75 = scmp.ne.s32.totalorder %s67, %s69
    %p76 = scmp.eq.s32.totalorder %s17, 1
    %p77 = por %p75, %p76
    %p78 = scmp.ne.s32.totalorder %s69, %s70
    %p79 = scmp.eq.s32.totalorder %s17, 0
    %p80 = por %p78, %p79
    %p81 = scmp.ne.s32.totalorder %s69, %s70
    %p82 = scmp.eq.s32.totalorder %s18, 1
    %p83 = por %p81, %p82
    %p85 = scmp.ne.s32.totalorder %s70, %s84
    %p86 = scmp.eq.s32.totalorder %s18, 0
    %p87 = por %p85, %p86
    %s88 = ssub.s32 %s12, %s19
    %p89 = scmp.eq.s32.totalorder %s88, 0
    %s91 = sadd.s32 %s90, 1
    %s92 = scalar_select %p89, %s90, %s91
    %p95 = pneg %p89
    %p96 = scmp.eq.s32.totalorder %s12, 1
    %p97 = por %p95, %p96
    %p98 = scmp.ne.s32.totalorder %s90, %s93
    %p99 = scmp.eq.s32.totalorder %s12, 0
    %p100 = por %p98, %p99
    %p101 = scmp.ne.s32.totalorder %s90, %s93
    %p102 = scmp.eq.s32.totalorder %s17, 1
    %p103 = por %p101, %p102
    %p104 = scmp.ne.s32.totalorder %s93, %s94
    %p105 = scmp.eq.s32.totalorder %s17, 0
    %p106 = por %p104, %p105
    %p107 = scmp.ne.s32.totalorder %s93, %s94
    %p108 = scmp.eq.s32.totalorder %s18, 1
    %p109 = por %p107, %p108
    %p111 = scmp.ne.s32.totalorder %s94, %s110
    %p112 = scmp.eq.s32.totalorder %s18, 0
    %p113 = por %p111, %p112
    %s114 = ssub.s32 %s12, %s19
    %p115 = scmp.eq.s32.totalorder %s114, 0
    %s117 = sadd.s32 %s116, 1
    %s118 = scalar_select %p115, %s116, %s117
    %p121 = pneg %p115
    %p122 = scmp.eq.s32.totalorder %s12, 1
    %p123 = por %p121, %p122
    %p124 = scmp.ne.s32.totalorder %s116, %s119
    %p125 = scmp.eq.s32.totalorder %s12, 0
    %p126 = por %p124, %p125
    %p127 = scmp.ne.s32.totalorder %s116, %s119
    %p128 = scmp.eq.s32.totalorder %s17, 1
    %p129 = por %p127, %p128
    %p130 = scmp.ne.s32.totalorder %s119, %s120
    %p131 = scmp.eq.s32.totalorder %s17, 0
    %p132 = por %p130, %p131
    %p133 = scmp.ne.s32.totalorder %s119, %s120
    %p134 = scmp.eq.s32.totalorder %s18, 1
    %p135 = por %p133, %p134
    %p137 = scmp.ne.s32.totalorder %s120, %s136
    %p138 = scmp.eq.s32.totalorder %s18, 0
    %p139 = por %p137, %p138
    %s140 = ssub.s32 %s12, %s19
    %p141 = scmp.eq.s32.totalorder %s140, 0
    %s143 = sadd.s32 %s142, 1
    %s144 = scalar_select %p141, %s142, %s143
    %p147 = pneg %p141
    %p148 = scmp.eq.s32.totalorder %s12, 1
    %p149 = por %p147, %p148
    %p150 = scmp.ne.s32.totalorder %s142, %s145
    %p151 = scmp.eq.s32.totalorder %s12, 0
    %p152 = por %p150, %p151
    %p153 = scmp.ne.s32.totalorder %s142, %s145
    %p154 = scmp.eq.s32.totalorder %s17, 1
    %p155 = por %p153, %p154
    %p156 = scmp.ne.s32.totalorder %s145, %s146
    %p157 = scmp.eq.s32.totalorder %s17, 0
    %p158 = por %p156, %p157
    %p159 = scmp.ne.s32.totalorder %s145, %s146
    %p160 = scmp.eq.s32.totalorder %s18, 1
    %p161 = por %p159, %p160
    %p163 = scmp.ne.s32.totalorder %s146, %s162
    %p164 = scmp.eq.s32.totalorder %s18, 0
    %p165 = por %p163, %p164
    %p166 = scmp.le.s32.totalorder 1, %s12
    %p167 = scmp.lt.s32.totalorder %s12, 3
    %p168 = pnand %p166, %p167
    %p169 = pneg %p168
    // Predicated region
    $region9: #{qrnn_forward.6} parent=5 // pred_check
      _
    $region10: #{qrnn_forward.6} parent=5 // pred_check_branch
      %171 = sbr.rel (%p168) target = $region12
    $region11: #{qrnn_forward.6} parent=5 // pred_region
      %s172 = ssub.s32 %s12, 1
      // Predicated region
      $region13: #{qrnn_forward.6} parent=11 // pred_check
        %p173 = pneg %p59
      $region14: #{qrnn_forward.6} parent=11 // pred_check_branch
        %175 = sbr.rel (%p173) target = $region16
      $region15: #{qrnn_forward.6} parent=11 // pred_region
        _
      $region16: #{qrnn_forward.6} parent=11 // pred_fallthru
        _
      // Predicated region
      $region17: #{qrnn_forward.6} parent=11 // pred_check
        %p176 = pneg %p80
      $region18: #{qrnn_forward.6} parent=11 // pred_check_branch
        %178 = sbr.rel (%p176) target = $region20
      $region19: #{qrnn_forward.6} parent=11 // pred_region
        _
      $region20: #{qrnn_forward.6} parent=11 // pred_fallthru
        _
    $region12: #{qrnn_forward.6} parent=5 // pred_fallthru
      _
    %p179 = scmp.lt.s32.totalorder %s12, 2
    // Predicated region
    $region21: #{qrnn_forward.6} parent=5 // pred_check
      %p180 = pneg %p179
    $region22: #{qrnn_forward.6} parent=5 // pred_check_branch
      %182 = sbr.rel (%p180) target = $region24
    $region23: #{qrnn_forward.6} parent=5 // pred_region
      // Predicated region
      $region25: #{qrnn_forward.6} parent=23 // pred_check
        %p183 = pneg %p32
      $region26: #{qrnn_forward.6} parent=23 // pred_check_branch
        %185 = sbr.rel (%p183) target = $region28
      $region27: #{qrnn_forward.6} parent=23 // pred_region
        %p186 = scmp.lt.s32.totalorder %s12, 1
        %s187 = scalar_select %p186, %s12, 1
        %s188 = smul.addr %s187, 8
        %s189 = scalar_lea.vmem %s0, %s188
      $region28: #{qrnn_forward.6} parent=23 // pred_fallthru
        _
    $region24: #{qrnn_forward.6} parent=5 // pred_fallthru
      _
    %p190 = scmp.le.s32.totalorder 1, %s12
    %p191 = scmp.lt.s32.totalorder %s12, 3
    %p192 = pnand %p190, %p191
    %p193 = pneg %p192
    // Predicated region
    $region29: #{qrnn_forward.6} parent=5 // pred_check
      _
    $region30: #{qrnn_forward.6} parent=5 // pred_check_branch
      %195 = sbr.rel (%p192) target = $region32
    $region31: #{qrnn_forward.6} parent=5 // pred_region
      %s196 = ssub.s32 %s12, 1
      %p197 = scmp.lt.s32.totalorder %s17, 1
      %s198 = scalar_select %p197, %s17, 1
      %s199 = smul.addr %s198, 8
      %s200 = scalar_lea.vmem %s0, %s199
      %p201 = pneg %p38
      %p202 = pneg %p35
      %p203 = pneg %p59
      %p204 = pneg %p56
      %p205 = pneg %p80
      %p206 = pneg %p77
      %p207 = pneg %p106
      %p208 = pneg %p103
      %p209 = scmp.lt.s32.totalorder %s17, 1
      %s210 = scalar_select %p209, %s17, 1
      %s211 = smul.addr %s210, 8
      %s212 = scalar_lea.vmem %s3, %s211
      %p213 = pneg %p132
      %p214 = pneg %p129
      %p215 = scmp.lt.s32.totalorder %s17, 1
      %s216 = scalar_select %p215, %s17, 1
      %s217 = smul.addr %s216, 8
      %s218 = scalar_lea.vmem %s4, %s217
      %p219 = pneg %p158
      %p220 = pneg %p155
      %p221 = scmp.lt.s32.totalorder %s17, 1
      %s222 = scalar_select %p221, %s17, 1
      %s223 = smul.addr %s222, 8
      %s224 = scalar_lea.vmem %s5, %s223
      %p225 = scmp.lt.s32.totalorder %s17, 1
      %s226 = scalar_select %p225, %s17, 1
      %s227 = smul.addr %s226, 8
      %s228 = scalar_lea.vmem %s0, %s227
      %p229 = scmp.lt.s32.totalorder %s17, 1
      %s230 = scalar_select %p229, %s17, 1
      %s231 = smul.addr %s230, 8
      %s232 = scalar_lea.vmem %s3, %s231
      %p233 = scmp.lt.s32.totalorder %s17, 1
      %s234 = scalar_select %p233, %s17, 1
      %s235 = smul.addr %s234, 8
      %s236 = scalar_lea.vmem %s4, %s235
      %p237 = scmp.lt.s32.totalorder %s17, 1
      %s238 = scalar_select %p237, %s17, 1
      %s239 = smul.addr %s238, 8
      %s240 = scalar_lea.vmem %s5, %s239
      %v241 = vld [vmem:[%s228] sm:$0xff]
      %v242 = vld [vmem:[%s1] sm:$0xff]
      %v243 = vld [vmem:[%s1 + $0x8] sm:$0xff]
      %v244 = vld [vmem:[%s1 + $0x10] sm:$0xff]
      %v245 = vld [vmem:[%s1 + $0x18] sm:$0xff]
      %v246 = vld [vmem:[%s1 + $0x20] sm:$0xff]
      %v247 = vld [vmem:[%s1 + $0x28] sm:$0xff]
      %v248 = vld [vmem:[%s1 + $0x30] sm:$0xff]
      %v249 = vld [vmem:[%s1 + $0x38] sm:$0xff]
      %v250 = vld [vmem:[%s1 + $0x40] sm:$0xff]
      %v251 = vld [vmem:[%s1 + $0x48] sm:$0xff]
      %v252 = vld [vmem:[%s1 + $0x50] sm:$0xff]
      %v253 = vld [vmem:[%s1 + $0x58] sm:$0xff]
      %v254 = vld [vmem:[%s2] sm:$0x7]
      %v256 = vlaneseq
      %v257 = vshrl.u32 %v256, 7
      %v258 = vsub.s32 0, %v257
      %v259 = vrot.slane %v254, %v258
      %v260 = vlaneseq
      %v261 = vshrl.u32 %v260, 7
      %v262 = vsub.s32 1, %v261
      %v263 = vrot.slane %v254, %v262
      %v264 = vlaneseq
      %v265 = vshrl.u32 %v264, 7
      %v266 = vsub.s32 2, %v265
      %v267 = vrot.slane %v254, %v266
      %vm271 = vcmask 261120
      %v273 = vsel %vm271, %v241, 0
      %275 = vmatprep.subr.mxu0 0.0
      %276 = vmatpush1.msra.mxu0 0.0
      %277 = vmatprep.subr.mxu0 0.0
      %278 = vmatpush1.msra.mxu0 0.0
      %279 = vmatprep.subr.mxu0 0.0
      %280 = vmatpush1.msra.mxu0 0.0
      %281 = vmatprep.subr.mxu0 0.0
      %282 = vmatpush1.msra.mxu0 0.0
      %283 = vmatprep.subr.mxu0 0.0
      %284 = vmatpush1.msra.mxu0 0.0
      %285 = vmatprep.subr.mxu0 0.0
      %286 = vmatpush1.msra.mxu0 0.0
      %287 = vmatprep.subr.mxu0 0.0
      %288 = vmatpush1.msra.mxu0 0.0
      %289 = vmatprep.subr.mxu0 0.0
      %290 = vmatpush1.msra.mxu0 0.0
      %291 = vmatprep.subr.mxu0 0.0
      %292 = vmatpush1.msra.mxu0 0.0
      %293 = vmatprep.subr.mxu0 0.0
      %294 = vmatpush1.msra.mxu0 0.0
      %295 = vmatprep.subr.mxu0 0.0
      %296 = vmatpush1.msra.mxu0 0.0
      %297 = vmatprep.subr.mxu0 0.0
      %298 = vmatpush1.msra.mxu0 0.0
      %299 = vmatprep.subr.mxu0 %v252
      %300 = vmatpush1.msra.mxu0 %v251
      %301 = vmatprep.subr.mxu0 %v249
      %302 = vmatpush1.msra.mxu0 %v248
      %303 = vmatprep.subr.mxu0 %v246
      %304 = vmatpush1.msra.mxu0 %v245
      %305 = vmatprep.subr.mxu0 %v243
      %306 = vmatpush1.msra.mxu0 %v242
      %307 = vmatprep.subr.mxu0 0.0
      %308 = vmatpush2.msra.mxu0 0.0
      %309 = vmatprep.subr.mxu0 0.0
      %310 = vmatpush2.msra.mxu0 0.0
      %311 = vmatprep.subr.mxu0 0.0
      %312 = vmatpush2.msra.mxu0 0.0
      %313 = vmatprep.subr.mxu0 0.0
      %314 = vmatpush2.msra.mxu0 0.0
      %315 = vmatprep.subr.mxu0 0.0
      %316 = vmatpush2.msra.mxu0 0.0
      %317 = vmatprep.subr.mxu0 0.0
      %318 = vmatpush2.msra.mxu0 0.0
      %319 = vmatprep.subr.mxu0 0.0
      %320 = vmatpush2.msra.mxu0 0.0
      %321 = vmatprep.subr.mxu0 0.0
      %322 = vmatpush2.msra.mxu0 0.0
      %323 = vmatprep.subr.mxu0 0.0
      %324 = vmatpush2.msra.mxu0 0.0
      %325 = vmatprep.subr.mxu0 0.0
      %326 = vmatpush2.msra.mxu0 0.0
      %327 = vmatprep.subr.mxu0 0.0
      %328 = vmatpush2.msra.mxu0 0.0
      %329 = vmatprep.subr.mxu0 0.0
      %330 = vmatpush2.msra.mxu0 0.0
      %331 = vmatprep.subr.mxu0 0.0
      %332 = vmatpush2.msra.mxu0 0.0
      %333 = vmatprep.subr.mxu0 0.0
      %334 = vmatpush2.msra.mxu0 0.0
      %335 = vmatprep.subr.mxu0 0.0
      %336 = vmatpush2.msra.mxu0 0.0
      %337 = vmatprep.subr.mxu0 0.0
      %338 = vmatpush2.msra.mxu0 0.0
      %339 = vmatprep.mubr.f32.mxu0 0.0
      %340 = vmatmul.mubr.f32.gmra.mxu0 %v273
      %v341 = vpop.f32.mrf.mxu0
      %v342 = vadd.f32 %v259, %v341
      %v343 = vpop.f32.mrf.mxu0
      %v344 = vadd.f32 %v263, %v343
      %345 = vdwg.mxu0
      %346 = vmatprep.subr.mxu0 0.0
      %347 = vmatpush1.msra.mxu0 0.0
      %348 = vmatprep.subr.mxu0 0.0
      %349 = vmatpush1.msra.mxu0 0.0
      %350 = vmatprep.subr.mxu0 0.0
      %351 = vmatpush1.msra.mxu0 0.0
      %352 = vmatprep.subr.mxu0 0.0
      %353 = vmatpush1.msra.mxu0 0.0
      %354 = vmatprep.subr.mxu0 0.0
      %355 = vmatpush1.msra.mxu0 0.0
      %356 = vmatprep.subr.mxu0 0.0
      %357 = vmatpush1.msra.mxu0 0.0
      %358 = vmatprep.subr.mxu0 0.0
      %359 = vmatpush1.msra.mxu0 0.0
      %360 = vmatprep.subr.mxu0 0.0
      %361 = vmatpush1.msra.mxu0 0.0
      %362 = vmatprep.subr.mxu0 0.0
      %363 = vmatpush1.msra.mxu0 0.0
      %364 = vmatprep.subr.mxu0 0.0
      %365 = vmatpush1.msra.mxu0 0.0
      %366 = vmatprep.subr.mxu0 0.0
      %367 = vmatpush1.msra.mxu0 0.0
      %368 = vmatprep.subr.mxu0 0.0
      %369 = vmatpush1.msra.mxu0 0.0
      %370 = vmatprep.subr.mxu0 0.0
      %371 = vmatpush1.msra.mxu0 %v253
      %372 = vmatprep.subr.mxu0 0.0
      %373 = vmatpush1.msra.mxu0 %v250
      %374 = vmatprep.subr.mxu0 0.0
      %375 = vmatpush1.msra.mxu0 %v247
      %376 = vmatprep.subr.mxu0 0.0
      %377 = vmatpush1.msra.mxu0 %v244
      %378 = vmatprep.subr.mxu0 0.0
      %379 = vmatpush2.msra.mxu0 0.0
      %380 = vmatprep.subr.mxu0 0.0
      %381 = vmatpush2.msra.mxu0 0.0
      %382 = vmatprep.subr.mxu0 0.0
      %383 = vmatpush2.msra.mxu0 0.0
      %384 = vmatprep.subr.mxu0 0.0
      %385 = vmatpush2.msra.mxu0 0.0
      %386 = vmatprep.subr.mxu0 0.0
      %387 = vmatpush2.msra.mxu0 0.0
      %388 = vmatprep.subr.mxu0 0.0
      %389 = vmatpush2.msra.mxu0 0.0
      %390 = vmatprep.subr.mxu0 0.0
      %391 = vmatpush2.msra.mxu0 0.0
      %392 = vmatprep.subr.mxu0 0.0
      %393 = vmatpush2.msra.mxu0 0.0
      %394 = vmatprep.subr.mxu0 0.0
      %395 = vmatpush2.msra.mxu0 0.0
      %396 = vmatprep.subr.mxu0 0.0
      %397 = vmatpush2.msra.mxu0 0.0
      %398 = vmatprep.subr.mxu0 0.0
      %399 = vmatpush2.msra.mxu0 0.0
      %400 = vmatprep.subr.mxu0 0.0
      %401 = vmatpush2.msra.mxu0 0.0
      %402 = vmatprep.subr.mxu0 0.0
      %403 = vmatpush2.msra.mxu0 0.0
      %404 = vmatprep.subr.mxu0 0.0
      %405 = vmatpush2.msra.mxu0 0.0
      %406 = vmatprep.subr.mxu0 0.0
      %407 = vmatpush2.msra.mxu0 0.0
      %408 = vmatprep.subr.mxu0 0.0
      %409 = vmatpush2.msra.mxu0 0.0
      %410 = vmatprep.mubr.f32.mxu0 0.0
      %411 = vmatmul.mubr.f32.gmra.mxu0 %v273
      %v412 = vpop.f32.mrf.mxu0
      %v413 = vadd.f32 %v267, %v412
      %v414 = vpop.f32.mrf.mxu0
      %415 = vdwg.mxu0
      %v416 = vtanh.pop %v342
      %417 = vst [vmem:[%s232] sm:$0xff] %v416
      %v418 = vxor.u32 %v344, 2147483648
      %v419 = vmul.f32 %v418, 1.442695
      %v420 = vpow.pop %v419
      %v421 = vadd.f32 %v420, 1.0
      %v422 = vrcp.pop %v421
      %v423 = vmul.f32 1.0, %v422
      %424 = vst [vmem:[%s236] sm:$0xff] %v423
      %v425 = vxor.u32 %v413, 2147483648
      %v426 = vmul.f32 %v425, 1.442695
      %v427 = vpow.pop %v426
      %v428 = vadd.f32 %v427, 1.0
      %v429 = vrcp.pop %v428
      %v430 = vmul.f32 1.0, %v429
      %431 = vst [vmem:[%s240] sm:$0xff] %v430
      %p432 = scmp.lt.s32.totalorder %s17, 1
      %s433 = scalar_select %p432, %s17, 1
      %s434 = smul.addr %s433, 8
      %s435 = scalar_lea.vmem %s3, %s434
      %p436 = scmp.lt.s32.totalorder %s17, 1
      %s437 = scalar_select %p436, %s17, 1
      %s438 = smul.addr %s437, 8
      %s439 = scalar_lea.vmem %s4, %s438
      %p440 = scmp.lt.s32.totalorder %s17, 1
      %s441 = scalar_select %p440, %s17, 1
      %s442 = smul.addr %s441, 8
      %s443 = scalar_lea.vmem %s5, %s442
      // Predicated region
      $region33: #{qrnn_forward.6} parent=31 // pred_check
        %p444 = pneg %p103
      $region34: #{qrnn_forward.6} parent=31 // pred_check_branch
        %446 = sbr.rel (%p444) target = $region36
      $region35: #{qrnn_forward.6} parent=31 // pred_region
        _
      $region36: #{qrnn_forward.6} parent=31 // pred_fallthru
        _
      // Predicated region
      $region37: #{qrnn_forward.6} parent=31 // pred_check
        %p447 = pneg %p129
      $region38: #{qrnn_forward.6} parent=31 // pred_check_branch
        %449 = sbr.rel (%p447) target = $region40
      $region39: #{qrnn_forward.6} parent=31 // pred_region
        _
      $region40: #{qrnn_forward.6} parent=31 // pred_fallthru
        _
      // Predicated region
      $region41: #{qrnn_forward.6} parent=31 // pred_check
        %p450 = pneg %p155
      $region42: #{qrnn_forward.6} parent=31 // pred_check_branch
        %452 = sbr.rel (%p450) target = $region44
      $region43: #{qrnn_forward.6} parent=31 // pred_region
        _
      $region44: #{qrnn_forward.6} parent=31 // pred_fallthru
        _
    $region32: #{qrnn_forward.6} parent=5 // pred_fallthru
      _
    %p453 = scmp.le.s32.totalorder 2, %s12
    // Predicated region
    $region45: #{qrnn_forward.6} parent=5 // pred_check
      %p454 = pneg %p453
    $region46: #{qrnn_forward.6} parent=5 // pred_check_branch
      %456 = sbr.rel (%p454) target = $region48
    $region47: #{qrnn_forward.6} parent=5 // pred_region
      %s457 = ssub.s32 %s12, 2
      // Predicated region
      $region49: #{qrnn_forward.6} parent=47 // pred_check
        %p458 = pneg %p109
      $region50: #{qrnn_forward.6} parent=47 // pred_check_branch
        %460 = sbr.rel (%p458) target = $region52
      $region51: #{qrnn_forward.6} parent=47 // pred_region
        %p461 = scmp.lt.s32.totalorder %s18, 1
        %s462 = scalar_select %p461, %s18, 1
        %s463 = smul.addr %s462, 8
        %s464 = scalar_lea.vmem %s3, %s463
      $region52: #{qrnn_forward.6} parent=47 // pred_fallthru
        _
      // Predicated region
      $region53: #{qrnn_forward.6} parent=47 // pred_check
        %p465 = pneg %p135
      $region54: #{qrnn_forward.6} parent=47 // pred_check_branch
        %467 = sbr.rel (%p465) target = $region56
      $region55: #{qrnn_forward.6} parent=47 // pred_region
        %p468 = scmp.lt.s32.totalorder %s18, 1
        %s469 = scalar_select %p468, %s18, 1
        %s470 = smul.addr %s469, 8
        %s471 = scalar_lea.vmem %s4, %s470
      $region56: #{qrnn_forward.6} parent=47 // pred_fallthru
        _
      // Predicated region
      $region57: #{qrnn_forward.6} parent=47 // pred_check
        %p472 = pneg %p161
      $region58: #{qrnn_forward.6} parent=47 // pred_check_branch
        %474 = sbr.rel (%p472) target = $region60
      $region59: #{qrnn_forward.6} parent=47 // pred_region
        %p475 = scmp.lt.s32.totalorder %s18, 1
        %s476 = scalar_select %p475, %s18, 1
        %s477 = smul.addr %s476, 8
        %s478 = scalar_lea.vmem %s5, %s477
      $region60: #{qrnn_forward.6} parent=47 // pred_fallthru
        _
    $region48: #{qrnn_forward.6} parent=5 // pred_fallthru
      _
  $region6: #{qrnn_forward.6} parent=0 // loop_footer
    %s16 = sadd.s32 1, %s12
  $region7: #{qrnn_forward.6} parent=0 // loop_footer_branch
    %11 = sbr.rel target = $region3
  $region8: #{qrnn_forward.6} parent=0 // loop_exit
    _

// kernel: qrnn_forward.7
$region0: #{qrnn_forward.7}
  #allocation0 [shape = 'u32[]', space=smem, size = 0x4, offset = 0x4, fixed_abs, tag = 'smem constant byte address 0x4 - core index']
  #allocation1 [shape = 'u32[144,128]{1,0:T(1,128)}', space=vmem, size = 0x12000, scoped, tag = 'internal scratch']
  #allocation2 [shape = 'f32[2,128]{1,0:T(2,128)}', space=vmem, size = 0x400, scoped, tag = 'scratch operand']
  %s0 = inlined_call_operand.vmem [shape: f32[8,2,128], index: 0, kind: input, shape index: {}]
  %s1 = inlined_call_operand.vmem [shape: f32[8,2,128], index: 1, kind: input, shape index: {}]
  %s2 = inlined_call_operand.vmem [shape: f32[8,2,128], index: 2, kind: input, shape index: {}]
  %s3 = inlined_call_operand.vmem [shape: f32[1,2,128], index: 3, kind: input, shape index: {}]
  %s4 = inlined_call_operand.hbm [shape: f32[8,2,128], index: 4, kind: output, shape index: {0}]
  %s5 = inlined_call_operand.vmem [shape: f32[1,2,128], index: 5, kind: output, shape index: {1}]
  %6 = xla_tuple %s4, %s5
  %s7 = sld [smem:[#allocation0]]
  $region42: #{qrnn_forward.7} parent=0
    _
  %s9 = ssub.s32 1, %s7
  %s10 = scalar_select 0, %s9, %s7
  $region1: #{qrnn_forward.7} parent=0
    #allocation3 [shape = 'u8[8192]{0}', space=vmem, size = 0x2000, scoped, tag = 'output window, operand 0, single buffered']
    #allocation4 [shape = 's32[1]{0}', space=sflag, size = 0x4, scoped, tag = 'scoped memory for qrnn_forward.7']
    %11 = vsyncpa [#allocation4], 0
    // Predicated region
    $region2: #{qrnn_forward.7} parent=1 // pred_check
      _
    $region3: #{qrnn_forward.7} parent=1 // pred_check_branch
      %13 = sbr.rel (0) target = $region5
    $region4: #{qrnn_forward.7} parent=1 // pred_region
      _
    $region5: #{qrnn_forward.7} parent=1 // pred_fallthru
      _
    // Predicated region
    $region6: #{qrnn_forward.7} parent=1 // pred_check
      _
    $region7: #{qrnn_forward.7} parent=1 // pred_check_branch
      %15 = sbr.rel (0) target = $region9
    $region8: #{qrnn_forward.7} parent=1 // pred_region
      _
    $region9: #{qrnn_forward.7} parent=1 // pred_fallthru
      _
    // Predicated region
    $region10: #{qrnn_forward.7} parent=1 // pred_check
      _
    $region11: #{qrnn_forward.7} parent=1 // pred_check_branch
      %17 = sbr.rel (0) target = $region13
    $region12: #{qrnn_forward.7} parent=1 // pred_region
      _
    $region13: #{qrnn_forward.7} parent=1 // pred_fallthru
      _
    // Predicated region
    $region14: #{qrnn_forward.7} parent=1 // pred_check
      _
    $region15: #{qrnn_forward.7} parent=1 // pred_check_branch
      %19 = sbr.rel (0) target = $region17
    $region16: #{qrnn_forward.7} parent=1 // pred_region
      _
    $region17: #{qrnn_forward.7} parent=1 // pred_fallthru
      _
    %p20 = scmp.eq.s32.totalorder 0, 0
    // Predicated region
    $region18: #{qrnn_forward.7} parent=1 // pred_check
      %p21 = pneg %p20
    $region19: #{qrnn_forward.7} parent=1 // pred_check_branch
      %23 = sbr.rel (%p21) target = $region21
    $region20: #{qrnn_forward.7} parent=1 // pred_region
      %v24 = vld [vmem:[%s3] sm:$0x3]
      %25 = vst [vmem:[#allocation2] sm:$0x3] %v24
    $region21: #{qrnn_forward.7} parent=1 // pred_fallthru
      _
    %v26 = vld [vmem:[#allocation2] sm:$0x3]
    %v27 = vld [vmem:[%s0] sm:$0x3]
    %v28 = vld [vmem:[%s1] sm:$0x3]
    %v29 = vld [vmem:[%s2] sm:$0x3]
    %v30 = vmul.f32 %v28, %v27
    %v31 = vsub.f32 1.0, %v28
    %v32 = vmul.f32 %v31, %v26
    %v33 = vadd.f32 %v30, %v32
    %v34 = vmul.f32 %v29, %v33
    %35 = vst [vmem:[#allocation3] sm:$0x3] %v34
    %s36 = scalar_lea.vmem %s0, 2
    %v37 = vld [vmem:[%s36] sm:$0x3]
    %s38 = scalar_lea.vmem %s1, 2
    %v39 = vld [vmem:[%s38] sm:$0x3]
    %s40 = scalar_lea.vmem %s2, 2
    %v41 = vld [vmem:[%s40] sm:$0x3]
    %v42 = vmul.f32 %v39, %v37
    %v43 = vsub.f32 1.0, %v39
    %v44 = vmul.f32 %v43, %v33
    %v45 = vadd.f32 %v42, %v44
    %v46 = vmul.f32 %v41, %v45
    %s47 = scalar_lea.vmem [#allocation3], 2
    %48 = vst [vmem:[%s47] sm:$0x3] %v46
    %s49 = scalar_lea.vmem %s0, 4
    %v50 = vld [vmem:[%s49] sm:$0x3]
    %s51 = scalar_lea.vmem %s1, 4
    %v52 = vld [vmem:[%s51] sm:$0x3]
    %s53 = scalar_lea.vmem %s2, 4
    %v54 = vld [vmem:[%s53] sm:$0x3]
    %v55 = vmul.f32 %v52, %v50
    %v56 = vsub.f32 1.0, %v52
    %v57 = vmul.f32 %v56, %v45
    %v58 = vadd.f32 %v55, %v57
    %v59 = vmul.f32 %v54, %v58
    %s60 = scalar_lea.vmem [#allocation3], 4
    %61 = vst [vmem:[%s60] sm:$0x3] %v59
    %s62 = scalar_lea.vmem %s0, 6
    %v63 = vld [vmem:[%s62] sm:$0x3]
    %s64 = scalar_lea.vmem %s1, 6
    %v65 = vld [vmem:[%s64] sm:$0x3]
    %s66 = scalar_lea.vmem %s2, 6
    %v67 = vld [vmem:[%s66] sm:$0x3]
    %v68 = vmul.f32 %v65, %v63
    %v69 = vsub.f32 1.0, %v65
    %v70 = vmul.f32 %v69, %v58
    %v71 = vadd.f32 %v68, %v70
    %v72 = vmul.f32 %v67, %v71
    %s73 = scalar_lea.vmem [#allocation3], 6
    %74 = vst [vmem:[%s73] sm:$0x3] %v72
    %s75 = scalar_lea.vmem %s0, 8
    %v76 = vld [vmem:[%s75] sm:$0x3]
    %s77 = scalar_lea.vmem %s1, 8
    %v78 = vld [vmem:[%s77] sm:$0x3]
    %s79 = scalar_lea.vmem %s2, 8
    %v80 = vld [vmem:[%s79] sm:$0x3]
    %v81 = vmul.f32 %v78, %v76
    %v82 = vsub.f32 1.0, %v78
    %v83 = vmul.f32 %v82, %v71
    %v84 = vadd.f32 %v81, %v83
    %v85 = vmul.f32 %v80, %v84
    %s86 = scalar_lea.vmem [#allocation3], 8
    %87 = vst [vmem:[%s86] sm:$0x3] %v85
    %s88 = scalar_lea.vmem %s0, 10
    %v89 = vld [vmem:[%s88] sm:$0x3]
    %s90 = scalar_lea.vmem %s1, 10
    %v91 = vld [vmem:[%s90] sm:$0x3]
    %s92 = scalar_lea.vmem %s2, 10
    %v93 = vld [vmem:[%s92] sm:$0x3]
    %v94 = vmul.f32 %v91, %v89
    %v95 = vsub.f32 1.0, %v91
    %v96 = vmul.f32 %v95, %v84
    %v97 = vadd.f32 %v94, %v96
    %v98 = vmul.f32 %v93, %v97
    %s99 = scalar_lea.vmem [#allocation3], 10
    %100 = vst [vmem:[%s99] sm:$0x3] %v98
    %s101 = scalar_lea.vmem %s0, 12
    %v102 = vld [vmem:[%s101] sm:$0x3]
    %s103 = scalar_lea.vmem %s1, 12
    %v104 = vld [vmem:[%s103] sm:$0x3]
    %s105 = scalar_lea.vmem %s2, 12
    %v106 = vld [vmem:[%s105] sm:$0x3]
    %v107 = vmul.f32 %v104, %v102
    %v108 = vsub.f32 1.0, %v104
    %v109 = vmul.f32 %v108, %v97
    %v110 = vadd.f32 %v107, %v109
    %v111 = vmul.f32 %v106, %v110
    %s112 = scalar_lea.vmem [#allocation3], 12
    %113 = vst [vmem:[%s112] sm:$0x3] %v111
    %s114 = scalar_lea.vmem %s0, 14
    %v115 = vld [vmem:[%s114] sm:$0x3]
    %s116 = scalar_lea.vmem %s1, 14
    %v117 = vld [vmem:[%s116] sm:$0x3]
    %s118 = scalar_lea.vmem %s2, 14
    %v119 = vld [vmem:[%s118] sm:$0x3]
    %v120 = vmul.f32 %v117, %v115
    %v121 = vsub.f32 1.0, %v117
    %v122 = vmul.f32 %v121, %v110
    %v123 = vadd.f32 %v120, %v122
    %v124 = vmul.f32 %v119, %v123
    %s125 = scalar_lea.vmem [#allocation3], 14
    %126 = vst [vmem:[%s125] sm:$0x3] %v124
    %127 = vst [vmem:[#allocation2] sm:$0x3] %v123
    // Predicated region
    $region22: #{qrnn_forward.7} parent=1 // pred_check
      %p128 = pneg %p20
    $region23: #{qrnn_forward.7} parent=1 // pred_check_branch
      %130 = sbr.rel (%p128) target = $region25
    $region24: #{qrnn_forward.7} parent=1 // pred_region
      %131 = vst [vmem:[%s5] sm:$0x3] %v123
    $region25: #{qrnn_forward.7} parent=1 // pred_fallthru
      _
    // Predicated region
    $region26: #{qrnn_forward.7} parent=1 // pred_check
      _
    $region27: #{qrnn_forward.7} parent=1 // pred_check_branch
      %133 = sbr.rel (0) target = $region29
    $region28: #{qrnn_forward.7} parent=1 // pred_region
      %s135 = ssub.s32 256, 256
      %136 = vsyncadd [#allocation4], %s135
      %s137 = sshll.u32 [#allocation3], 4
      %s138 = int_to_ptr.vmem [resolvable:$true] %s137
      %143 = dma.vmem_to_hbm [thread:$0]  %s138, 256, %s4, [#allocation4], 32, 32, 2
    $region29: #{qrnn_forward.7} parent=1 // pred_fallthru
      _
    // Predicated region
    $region30: #{qrnn_forward.7} parent=1 // pred_check
      _
    $region31: #{qrnn_forward.7} parent=1 // pred_check_branch
      %145 = sbr.rel (0) target = $region33
    $region32: #{qrnn_forward.7} parent=1 // pred_region
      _
    $region33: #{qrnn_forward.7} parent=1 // pred_fallthru
      _
    // Predicated region
    $region34: #{qrnn_forward.7} parent=1 // pred_check
      _
    $region35: #{qrnn_forward.7} parent=1 // pred_check_branch
      %147 = sbr.rel (0) target = $region37
    $region36: #{qrnn_forward.7} parent=1 // pred_region
      %148 = dma.done [#allocation4], 256
    $region37: #{qrnn_forward.7} parent=1 // pred_fallthru
      _
    // Predicated region
    $region38: #{qrnn_forward.7} parent=1 // pred_check
      _
    $region39: #{qrnn_forward.7} parent=1 // pred_check_branch
      %150 = sbr.rel (0) target = $region41
    $region40: #{qrnn_forward.7} parent=1 // pred_region
      _
    $region41: #{qrnn_forward.7} parent=1 // pred_fallthru
      _
    %151 = vsyncpa [#allocation4], 1

</llo_original>
